<compile_context>
chip_gen: v5e
topology: v5e:2x2
jax: 0.10.0
libtpu: 0.0.40
codegen_flags: <defaults>
</compile_context>

<pallas_src>
import jax
import jax.numpy as jnp
import numpy as np
from jax import lax
from jax.experimental import pallas as pl
from jax.experimental.pallas import tpu as pltpu

_EPS = 1e-6  # NAFNet LayerNorm2d epsilon


# --------------------------------------------------------------------------------------
# Stage 1: norm1 -> conv1 (1x1) -> depthwise 3x3 conv2 -> SimpleGate (+ SCA partial sums)
# --------------------------------------------------------------------------------------
def _stage1_kernel(x_ref, up_ref, dn_ref, ln_w_ref, ln_b_ref,
                   w1_ref, b1_ref, w2_ref, b2_ref,
                   g_ref, psum_ref):
    i = pl.program_id(1)
    n_rt = pl.num_programs(1)
    C, TP = x_ref.shape[1], x_ref.shape[2]          # channels, pixels in this row tile
    W = up_ref.shape[3]                             # image width (pixels per row)
    DW = w1_ref.shape[0]                            # dw_channel = 2*C
    Pext = TP + 2 * W                               # tile + one halo row above & below

    # Assemble [halo_up | tile | halo_dn] along the (lane) pixel axis.
    x = jnp.concatenate(
        [up_ref[0, 0], x_ref[0], dn_ref[0, 0]], axis=1).astype(jnp.float32)   # (C, Pext)

    # LayerNorm over channels (sublane axis), per pixel.  Single-pass statistics.
    mu = jnp.mean(x, axis=0, keepdims=True)
    ms = jnp.mean(x * x, axis=0, keepdims=True)
    var = jnp.maximum(ms - mu * mu, 0.0)
    xn = (x - mu) * lax.rsqrt(var + _EPS) * ln_w_ref[...] + ln_b_ref[...]

    # conv1: 1x1, C -> DW.  Single MXU matmul over the channel dim (bf16 operands when
    # enabled, f32 accumulation).
    h = jnp.dot(w1_ref[...], xn.astype(w1_ref.dtype),
                preferred_element_type=jnp.float32) + b1_ref[...]

    # conv2's zero padding applies to conv1's *output*: zero the halo rows when the
    # tile touches the top / bottom image border.
    pix = lax.broadcasted_iota(jnp.int32, (1, Pext), 1)
    h = jnp.where((i == 0) & (pix < W), 0.0, h)
    h = jnp.where((i == n_rt - 1) & (pix >= Pext - W), 0.0, h)

    # Depthwise 3x3 conv (padding=1) on the flattened pixel axis.
    # Build the dw = -1 / +1 shifted copies of h ONCE (2 misaligned lane shifts + 2
    # border selects total); each dh tap is then a W-aligned static slice of one of
    # the three buffers.  The column masks handle the left/right image borders and
    # the row wrap-around of the flattened layout.
    col = pix % W
    zl = jnp.zeros((DW, 1), jnp.float32)
    h_m1 = jnp.where(col >= 1,
                     jnp.concatenate([zl, h[:, :Pext - 1]], axis=1), 0.0)   # h[q-1]
    h_p1 = jnp.where(col <= W - 2,
                     jnp.concatenate([h[:, 1:], zl], axis=1), 0.0)          # h[q+1]
    # TODO(synk): v7x — fold conv2 into conv1 as a single (DW, 9*C) MXU matmul over
    # nine shifted copies of xn; the MXU is nearly idle here while the VPU saturates.

    w2 = w2_ref[...]                                                        # (DW, 9)
    acc = jnp.zeros((DW, TP), jnp.float32)
    for dh in (-1, 0, 1):
        off = (dh + 1) * W
        for dwi, buf in enumerate((h_m1, h, h_p1)):                         # dw=-1,0,+1
            k = (dh + 1) * 3 + dwi
            acc = acc + buf[:, off:off + TP] * w2[:, k:k + 1]
    acc = acc + b2_ref[...]

    # SimpleGate: chunk the DW channels in half (sublane axis) and multiply.
    g = acc[:C, :] * acc[C:, :]                                             # (C, TP)
    g_ref[0] = g.astype(g_ref.dtype)                                        # bf16 store
    # Per-tile spatial sum (f32) for the SCA global average pool (finished in wrapper).
    psum_ref[0, 0] = jnp.sum(g, axis=1, keepdims=True)


# --------------------------------------------------------------------------------------
# Stage 2: x*sca -> conv3 -> +beta residual -> norm2 -> conv4 -> SimpleGate -> conv5 -> out
# --------------------------------------------------------------------------------------
def _stage2_kernel(g_ref, x_ref, sca_ref,
                   w3_ref, b3_ref, ln_w_ref, ln_b_ref,
                   w4_ref, b4_ref, w5_ref, b5_ref,
                   beta_ref, gamma_ref, o_ref):
    g = g_ref[0].astype(jnp.float32)                                # (C, TP)
    inp = x_ref[0].astype(jnp.float32)                              # (C, TP)
    wd = w3_ref.dtype                                               # bf16 or f32

    # Simplified channel attention + conv3 + first residual.
    t = g * sca_ref[0]                                              # (C, 1) broadcast
    t = jnp.dot(w3_ref[...], t.astype(wd),
                preferred_element_type=jnp.float32) + b3_ref[...]
    y = inp + t * beta_ref[...]

    # norm2 (single-pass stats) -> conv4 (1x1) -> SimpleGate -> conv5 (1x1) -> residual.
    mu = jnp.mean(y, axis=0, keepdims=True)
    ms = jnp.mean(y * y, axis=0, keepdims=True)
    var = jnp.maximum(ms - mu * mu, 0.0)
    t = (y - mu) * lax.rsqrt(var + _EPS) * ln_w_ref[...] + ln_b_ref[...]
    t = jnp.dot(w4_ref[...], t.astype(wd),
                preferred_element_type=jnp.float32) + b4_ref[...]
    half = w4_ref.shape[0] // 2
    t = t[:half, :] * t[half:, :]
    t = jnp.dot(w5_ref[...], t.astype(wd),
                preferred_element_type=jnp.float32) + b5_ref[...]
    o_ref[0] = (y + t * gamma_ref[...]).astype(o_ref.dtype)


# --------------------------------------------------------------------------------------
# Wrapper
# --------------------------------------------------------------------------------------
def _vmem_capacity_bytes():
    """Per-core VMEM capacity; conservative 64 MiB (v7x) fallback if the query fails."""
    try:
        info = pltpu.get_tpu_info()
        cap = getattr(info, "vmem_capacity_bytes", None)
        if cap:
            return int(cap)
    except Exception:
        pass
    return 64 << 20


def _pick_tile_rows(H, W, target_pixels, prefer_split):
    """Largest row-tile TH dividing H with TH*W lane-aligned (multiple of 128) and
    <= target_pixels.  If prefer_split (B == 1), prefer >= 2 tiles so both v7x
    TensorCores get work.  Guarded whole-image fallback for ragged shapes."""
    cands = [th for th in range(1, H + 1)
             if H % th == 0 and (th * W) % 128 == 0 and th * W <= target_pixels]
    if prefer_split:
        split = [th for th in cands if th < H]
        if split:
            return max(split)
    if cands:
        return max(cands)
    # TODO(synk): handle ragged H*W (no 128-aligned row tile exists) with a masked last
    # tile / padded W instead of this whole-image fallback.
    return H


def nafblock_forward(x, params, tile_rows=None, target_pixels=None, use_bf16=True):
    """NAFBlock forward.  x: (B, C, H, W) float array; params as documented in main."""
    B, C, H, W = x.shape
    DW = params["w1"].shape[0]
    FFN = params["w4"].shape[0]
    HW = H * W
    itm = jnp.dtype(x.dtype).itemsize
    g_itm = 2 if use_bf16 else itm
    vmem_cap = _vmem_capacity_bytes()

    if target_pixels is None:
        # Rough per-pixel stage-1 VMEM footprint: double-buffered x / g blocks + f32
        # temporaries (x, xn, h, h_m1, h_p1, acc).  Target ~60% of physical VMEM.
        per_px = C * (2 * itm + 2 * g_itm + 2 * 4) + 4 * DW * 4
        target_pixels = int(np.clip((int(vmem_cap * 0.6) // max(per_px, 1)) // 128 * 128,
                                    128, 32768))

    if (tile_rows is not None and H % tile_rows == 0
            and ((tile_rows * W) % 128 == 0 or tile_rows == H)):
        TH = int(tile_rows)
    else:
        TH = _pick_tile_rows(H, W, target_pixels, prefer_split=(B < 2))
    n_tiles = H // TH
    TP = TH * W
    Pext = TP + 2 * W

    xf = x.reshape(B, C, HW)
    g_dtype = jnp.bfloat16 if use_bf16 else x.dtype
    w_dtype = jnp.bfloat16 if use_bf16 else jnp.float32
    w1 = params["w1"].astype(w_dtype)
    w3 = params["w3"].astype(w_dtype)
    w4 = params["w4"].astype(w_dtype)
    w5 = params["w5"].astype(w_dtype)

    # One-row halos above/below each tile, gathered once (tiny) -- no full-tensor pads.
    # Contents at the image border are irrelevant: the kernel zeroes them after conv1.
    up_idx = np.clip(np.arange(n_tiles) * TH - 1, 0, H - 1)
    dn_idx = np.clip(np.arange(n_tiles) * TH + TH, 0, H - 1)
    halo_up = jnp.transpose(x[:, :, up_idx, :], (0, 2, 1, 3))       # (B, n_tiles, C, W)
    halo_dn = jnp.transpose(x[:, :, dn_idx, :], (0, 2, 1, 3))

    # VMEM budget: double-buffered I/O blocks + in-kernel temporaries + headroom,
    # clamped to the queried per-core capacity (64 MiB v7x, 128 MiB v5e/v6e).
    s1 = (2 * (C * TP * itm + 2 * C * W * itm) + 2 * C * TP * g_itm
          + (2 * C + 4 * DW) * Pext * 4)
    s2 = 2 * C * TP * (g_itm + 2 * itm) + (4 * C + 2 * FFN) * TP * 4
    vmem_bytes = int(max(16 << 20,
                         min(max(max(s1, s2) + (8 << 20), 32 << 20),
                             vmem_cap - (4 << 20))))
    cparams = pltpu.CompilerParams(
        dimension_semantics=("parallel", "parallel"),
        vmem_limit_bytes=vmem_bytes,
    )

    g, psum = pl.pallas_call(
        _stage1_kernel,
        out_shape=(
            jax.ShapeDtypeStruct((B, C, HW), g_dtype),
            jax.ShapeDtypeStruct((B, n_tiles, C, 1), jnp.float32),
        ),
        grid=(B, n_tiles),
        in_specs=[
            pl.BlockSpec((1, C, TP), lambda b, i: (b, 0, i)),        # input tile
            pl.BlockSpec((1, 1, C, W), lambda b, i: (b, i, 0, 0)),   # halo row above
            pl.BlockSpec((1, 1, C, W), lambda b, i: (b, i, 0, 0)),   # halo row below
            pl.BlockSpec((C, 1), lambda b, i: (0, 0)),               # norm1 weight
            pl.BlockSpec((C, 1), lambda b, i: (0, 0)),               # norm1 bias
            pl.BlockSpec((DW, C), lambda b, i: (0, 0)),              # conv1 weight
            pl.BlockSpec((DW, 1), lambda b, i: (0, 0)),              # conv1 bias
            pl.BlockSpec((DW, 9), lambda b, i: (0, 0)),              # conv2 (dw 3x3) weight
            pl.BlockSpec((DW, 1), lambda b, i: (0, 0)),              # conv2 bias
        ],
        out_specs=(
            pl.BlockSpec((1, C, TP), lambda b, i: (b, 0, i)),        # SimpleGate output
            pl.BlockSpec((1, 1, C, 1), lambda b, i: (b, i, 0, 0)),   # SCA partial sums
        ),
        compiler_params=cparams,
    )(xf, halo_up, halo_dn,
      params["ln1_w"], params["ln1_b"],
      w1, params["b1"], params["w2"], params["b2"])

    # SCA: finish the global average pool and its 1x1 conv (tiny: (B,C)x(C,C)), in f32.
    pooled = jnp.sum(psum[:, :, :, 0], axis=1) / float(HW)           # (B, C)
    sca = pooled @ params["w_sca"].T + params["b_sca"]               # (B, C)
    sca = sca[:, :, None].astype(jnp.float32)                        # (B, C, 1)

    out = pl.pallas_call(
        _stage2_kernel,
        out_shape=jax.ShapeDtypeStruct((B, C, HW), x.dtype),
        grid=(B, n_tiles),
        in_specs=[
            pl.BlockSpec((1, C, TP), lambda b, i: (b, 0, i)),        # g (SimpleGate out)
            pl.BlockSpec((1, C, TP), lambda b, i: (b, 0, i)),        # inp (residuals)
            pl.BlockSpec((1, C, 1), lambda b, i: (b, 0, 0)),         # sca vector
            pl.BlockSpec((C, C), lambda b, i: (0, 0)),               # conv3 weight
            pl.BlockSpec((C, 1), lambda b, i: (0, 0)),               # conv3 bias
            pl.BlockSpec((C, 1), lambda b, i: (0, 0)),               # norm2 weight
            pl.BlockSpec((C, 1), lambda b, i: (0, 0)),               # norm2 bias
            pl.BlockSpec((FFN, C), lambda b, i: (0, 0)),             # conv4 weight
            pl.BlockSpec((FFN, 1), lambda b, i: (0, 0)),             # conv4 bias
            pl.BlockSpec((C, FFN // 2), lambda b, i: (0, 0)),        # conv5 weight
            pl.BlockSpec((C, 1), lambda b, i: (0, 0)),               # conv5 bias
            pl.BlockSpec((C, 1), lambda b, i: (0, 0)),               # beta
            pl.BlockSpec((C, 1), lambda b, i: (0, 0)),               # gamma
        ],
        out_specs=pl.BlockSpec((1, C, TP), lambda b, i: (b, 0, i)),
        compiler_params=cparams,
    )(g, xf, sca,
      w3, params["b3"], params["ln2_w"], params["ln2_b"],
      w4, params["b4"], w5, params["b5"],
      params["beta"], params["gamma"])

    return out.reshape(B, C, H, W)


# --------------------------------------------------------------------------------------
# Pure-JAX reference (numerical check only)
# --------------------------------------------------------------------------------------
def reference_forward(x, p):
    B, C, H, W = x.shape
    hi = lax.Precision.HIGHEST

    def ln(z, w, b):
        mu = z.mean(axis=1, keepdims=True)
        var = ((z - mu) ** 2).mean(axis=1, keepdims=True)
        return (z - mu) / jnp.sqrt(var + _EPS) * w[None, :, :, None] + b[None, :, :, None]

    def conv1x1(z, w, b):
        return jnp.einsum("oc,bchw->bohw", w, z, precision=hi) + b[None, :, :, None]

    def dwconv3x3(z, w, b):
        k = w.reshape(-1, 1, 3, 3)
        out = lax.conv_general_dilated(
            z, k, (1, 1), "SAME",
            dimension_numbers=("NCHW", "OIHW", "NCHW"),
            feature_group_count=z.shape[1], precision=hi)
        return out + b[None, :, :, None]

    t = conv1x1(ln(x, p["ln1_w"], p["ln1_b"]), p["w1"], p["b1"])
    t = dwconv3x3(t, p["w2"], p["b2"])
    t = t[:, :C] * t[:, C:]
    pooled = t.mean(axis=(2, 3))
    sca = pooled @ p["w_sca"].T + p["b_sca"]
    t = t * sca[:, :, None, None]
    t = conv1x1(t, p["w3"], p["b3"])
    y = x + t * p["beta"][None, :, :, None]
    t = conv1x1(ln(y, p["ln2_w"], p["ln2_b"]), p["w4"], p["b4"])
    t = t[:, :C] * t[:, C:]
    t = conv1x1(t, p["w5"], p["b5"])
    return y + t * p["gamma"][None, :, :, None]


if __name__ == "__main__":
    B, C, H, W = 2, 16, 16, 16          # small, TPU-friendly demo shapes
    DW, FFN = 2 * C, 2 * C

    key = jax.random.PRNGKey(0)
    ks = jax.random.split(key, 18)

    def rnd(k, shape, scale):
        return jax.random.normal(k, shape, jnp.float32) * scale

    # Parameter layouts (PyTorch correspondence):
    #   ln*_w/b : norm*.weight / .bias          -> (C, 1)
    #   w1      : conv1.weight[:, :, 0, 0]      -> (DW, C)    b1: (DW, 1)
    #   w2      : conv2.weight.reshape(DW, 9)   -> (DW, 9)    b2: (DW, 1)  (depthwise 3x3)
    #   w_sca   : sca[1].weight[:, :, 0, 0]     -> (C, C)     b_sca: (C,)
    #   w3/w4/w5: conv{3,4,5}.weight[:, :, 0, 0]              b*: (*, 1)
    #   beta, gamma: (C, 1)  (the module initializes them to ZERO, making the block an
    #                         identity; random values here so the check exercises the
    #                         full path).  Dropouts (rate 0.0) are identities.
    params = dict(
        ln1_w=jnp.ones((C, 1), jnp.float32),
        ln1_b=jnp.zeros((C, 1), jnp.float32),
        w1=rnd(ks[0], (DW, C), 1.0 / np.sqrt(C)),
        b1=rnd(ks[1], (DW, 1), 0.02),
        w2=rnd(ks[2], (DW, 9), 1.0 / 3.0),
        b2=rnd(ks[3], (DW, 1), 0.02),
        w_sca=rnd(ks[4], (C, C), 1.0 / np.sqrt(C)),
        b_sca=rnd(ks[5], (C,), 0.02),
        w3=rnd(ks[6], (C, C), 1.0 / np.sqrt(C)),
        b3=rnd(ks[7], (C, 1), 0.02),
        ln2_w=jnp.ones((C, 1), jnp.float32) + rnd(ks[8], (C, 1), 0.1),
        ln2_b=rnd(ks[9], (C, 1), 0.02),
        w4=rnd(ks[10], (FFN, C), 1.0 / np.sqrt(C)),
        b4=rnd(ks[11], (FFN, 1), 0.02),
        w5=rnd(ks[12], (C, FFN // 2), 1.0 / np.sqrt(FFN // 2)),
        b5=rnd(ks[13], (C, 1), 0.02),
        beta=rnd(ks[14], (C, 1), 0.5),
        gamma=rnd(ks[15], (C, 1), 0.5),
    )
    x = rnd(ks[16], (B, C, H, W), 1.0)

    fwd = jax.jit(nafblock_forward,
                  static_argnames=("tile_rows", "target_pixels", "use_bf16"))
    ref = reference_forward(x, params)
    ref_np = np.asarray(ref)

    # 1) Full-f32 path (tight structural check; exercises the halo / multi-tile path).
    out_f32 = jax.block_until_ready(fwd(x, params, tile_rows=8, use_bf16=False))
    np.testing.assert_allclose(np.asarray(out_f32), ref_np, rtol=2e-3, atol=2e-3)

    # 2) bf16 g round-trip + bf16 MXU operands (default), tiled and auto-tiled paths.
    out_bf16_tiled = jax.block_until_ready(fwd(x, params, tile_rows=8))
    out_bf16_auto = jax.block_until_ready(fwd(x, params))
    for o in (out_bf16_tiled, out_bf16_auto):
        rel = (np.linalg.norm(np.asarray(o, np.float32) - ref_np)
               / np.linalg.norm(ref_np))
        assert rel < 0.05, f"bf16 path relative L2 error too high: {rel}"

    print("KERNEL_OK")
</pallas_src>

<mosaic_0001>
module attributes {stable_mosaic.version = 11 : i64} {
  func.func @_stage2_kernel(%arg0: i32, %arg1: i32, %arg2: memref<1x16x128xf32, #tpu.memory_space<vmem>>, %arg3: memref<1x16x128xf32, #tpu.memory_space<vmem>>, %arg4: memref<1x16x1xf32, #tpu.memory_space<vmem>>, %arg5: memref<16x16xf32, #tpu.memory_space<vmem>>, %arg6: memref<16x1xf32, #tpu.memory_space<vmem>>, %arg7: memref<16x1xf32, #tpu.memory_space<vmem>>, %arg8: memref<16x1xf32, #tpu.memory_space<vmem>>, %arg9: memref<32x16xf32, #tpu.memory_space<vmem>>, %arg10: memref<32x1xf32, #tpu.memory_space<vmem>>, %arg11: memref<16x16xf32, #tpu.memory_space<vmem>>, %arg12: memref<16x1xf32, #tpu.memory_space<vmem>>, %arg13: memref<16x1xf32, #tpu.memory_space<vmem>>, %arg14: memref<16x1xf32, #tpu.memory_space<vmem>>, %arg15: memref<1x16x128xf32, #tpu.memory_space<vmem>>) attributes {dimension_semantics = [#tpu.dimension_semantics<parallel>, #tpu.dimension_semantics<parallel>], iteration_bounds = array<i64: 2, 2>, scalar_prefetch = 0 : i64, scratch_operands = 0 : i64, tpu.core_type = #tpu.core_type<tc>, window_params = [{transform_indices = @transform_0, window_bounds = array<i64: 1, 16, 128>}, {transform_indices = @transform_1, window_bounds = array<i64: 1, 16, 128>}, {transform_indices = @transform_2, window_bounds = array<i64: 1, 16, 1>}, {pipeline_mode = #tpu.pipeline_mode<synchronous>, transform_indices = @transform_3, window_bounds = array<i64: 16, 16>}, {pipeline_mode = #tpu.pipeline_mode<synchronous>, transform_indices = @transform_4, window_bounds = array<i64: 16, 1>}, {pipeline_mode = #tpu.pipeline_mode<synchronous>, transform_indices = @transform_5, window_bounds = array<i64: 16, 1>}, {pipeline_mode = #tpu.pipeline_mode<synchronous>, transform_indices = @transform_6, window_bounds = array<i64: 16, 1>}, {pipeline_mode = #tpu.pipeline_mode<synchronous>, transform_indices = @transform_7, window_bounds = array<i64: 32, 16>}, {pipeline_mode = #tpu.pipeline_mode<synchronous>, transform_indices = @transform_8, window_bounds = array<i64: 32, 1>}, {pipeline_mode = #tpu.pipeline_mode<synchronous>, transform_indices = @transform_9, window_bounds = array<i64: 16, 16>}, {pipeline_mode = #tpu.pipeline_mode<synchronous>, transform_indices = @transform_10, window_bounds = array<i64: 16, 1>}, {pipeline_mode = #tpu.pipeline_mode<synchronous>, transform_indices = @transform_11, window_bounds = array<i64: 16, 1>}, {pipeline_mode = #tpu.pipeline_mode<synchronous>, transform_indices = @transform_12, window_bounds = array<i64: 16, 1>}, {transform_indices = @transform_13, window_bounds = array<i64: 1, 16, 128>}]} {
    %c0 = arith.constant 0 : index
    %c0_0 = arith.constant 0 : index
    %c0_1 = arith.constant 0 : index
    %0 = vector.load %arg2[%c0, %c0_0, %c0_1] : memref<1x16x128xf32, #tpu.memory_space<vmem>>, vector<1x16x128xf32>
    %1 = vector.shape_cast %0 : vector<1x16x128xf32> to vector<16x128xf32>
    %c0_2 = arith.constant 0 : index
    %c0_3 = arith.constant 0 : index
    %c0_4 = arith.constant 0 : index
    %2 = vector.load %arg3[%c0_2, %c0_3, %c0_4] : memref<1x16x128xf32, #tpu.memory_space<vmem>>, vector<1x16x128xf32>
    %3 = vector.shape_cast %2 : vector<1x16x128xf32> to vector<16x128xf32>
    %c0_5 = arith.constant 0 : index
    %c0_6 = arith.constant 0 : index
    %c0_7 = arith.constant 0 : index
    %4 = vector.load %arg4[%c0_5, %c0_6, %c0_7] : memref<1x16x1xf32, #tpu.memory_space<vmem>>, vector<1x16x1xf32>
    %5 = vector.shape_cast %4 : vector<1x16x1xf32> to vector<16x1xf32>
    %6 = vector.broadcast %5 : vector<16x1xf32> to vector<16x128xf32>
    %7 = arith.mulf %1, %6 : vector<16x128xf32>
    %c0_8 = arith.constant 0 : index
    %c0_9 = arith.constant 0 : index
    %8 = vector.load %arg5[%c0_8, %c0_9] : memref<16x16xf32, #tpu.memory_space<vmem>>, vector<16x16xf32>
    %cst = arith.constant dense<0.000000e+00> : vector<16x128xf32>
    %9 = tpu.matmul %8, %7, %cst {dimension_numbers = #tpu.dot_dimension_numbers<[1], [0], [0], [1], [0, 0, 1, 1], [], []>} : vector<16x16xf32>, vector<16x128xf32>, vector<16x128xf32> -> vector<16x128xf32>
    %c0_10 = arith.constant 0 : index
    %c0_11 = arith.constant 0 : index
    %10 = vector.load %arg6[%c0_10, %c0_11] : memref<16x1xf32, #tpu.memory_space<vmem>>, vector<16x1xf32>
    %11 = vector.broadcast %10 : vector<16x1xf32> to vector<16x128xf32>
    %12 = arith.addf %9, %11 : vector<16x128xf32>
    %c0_12 = arith.constant 0 : index
    %c0_13 = arith.constant 0 : index
    %13 = vector.load %arg13[%c0_12, %c0_13] : memref<16x1xf32, #tpu.memory_space<vmem>>, vector<16x1xf32>
    %14 = vector.broadcast %13 : vector<16x1xf32> to vector<16x128xf32>
    %15 = arith.mulf %12, %14 : vector<16x128xf32>
    %16 = arith.addf %3, %15 : vector<16x128xf32>
    %cst_14 = arith.constant dense<0.000000e+00> : vector<128xf32>
    %17 = vector.multi_reduction <add>, %16, %cst_14 [0] : vector<16x128xf32> to vector<128xf32>
    %18 = vector.shape_cast %17 : vector<128xf32> to vector<1x128xf32>
    %cst_15 = arith.constant 1.600000e+01 : f32
    %19 = vector.broadcast %cst_15 : f32 to vector<1x128xf32>
    %20 = arith.divf %18, %19 : vector<1x128xf32>
    %21 = arith.mulf %16, %16 : vector<16x128xf32>
    %cst_16 = arith.constant dense<0.000000e+00> : vector<128xf32>
    %22 = vector.multi_reduction <add>, %21, %cst_16 [0] : vector<16x128xf32> to vector<128xf32>
    %23 = vector.shape_cast %22 : vector<128xf32> to vector<1x128xf32>
    %cst_17 = arith.constant 1.600000e+01 : f32
    %24 = vector.broadcast %cst_17 : f32 to vector<1x128xf32>
    %25 = arith.divf %23, %24 : vector<1x128xf32>
    %26 = arith.mulf %20, %20 : vector<1x128xf32>
    %27 = arith.subf %25, %26 : vector<1x128xf32>
    %cst_18 = arith.constant 0.000000e+00 : f32
    %28 = vector.broadcast %cst_18 : f32 to vector<1x128xf32>
    %29 = arith.maximumf %27, %28 : vector<1x128xf32>
    %30 = vector.broadcast %20 : vector<1x128xf32> to vector<16x128xf32>
    %31 = arith.subf %16, %30 : vector<16x128xf32>
    %cst_19 = arith.constant 9.99999997E-7 : f32
    %32 = vector.broadcast %cst_19 : f32 to vector<1x128xf32>
    %33 = arith.addf %29, %32 : vector<1x128xf32>
    %34 = math.rsqrt %33 : vector<1x128xf32>
    %35 = vector.broadcast %34 : vector<1x128xf32> to vector<16x128xf32>
    %36 = arith.mulf %31, %35 : vector<16x128xf32>
    %c0_20 = arith.constant 0 : index
    %c0_21 = arith.constant 0 : index
    %37 = vector.load %arg7[%c0_20, %c0_21] : memref<16x1xf32, #tpu.memory_space<vmem>>, vector<16x1xf32>
    %38 = vector.broadcast %37 : vector<16x1xf32> to vector<16x128xf32>
    %39 = arith.mulf %36, %38 : vector<16x128xf32>
    %c0_22 = arith.constant 0 : index
    %c0_23 = arith.constant 0 : index
    %40 = vector.load %arg8[%c0_22, %c0_23] : memref<16x1xf32, #tpu.memory_space<vmem>>, vector<16x1xf32>
    %41 = vector.broadcast %40 : vector<16x1xf32> to vector<16x128xf32>
    %42 = arith.addf %39, %41 : vector<16x128xf32>
    %c0_24 = arith.constant 0 : index
    %c0_25 = arith.constant 0 : index
    %43 = vector.load %arg9[%c0_24, %c0_25] : memref<32x16xf32, #tpu.memory_space<vmem>>, vector<32x16xf32>
    %cst_26 = arith.constant dense<0.000000e+00> : vector<32x128xf32>
    %44 = tpu.matmul %43, %42, %cst_26 {dimension_numbers = #tpu.dot_dimension_numbers<[1], [0], [0], [1], [0, 0, 1, 1], [], []>} : vector<32x16xf32>, vector<16x128xf32>, vector<32x128xf32> -> vector<32x128xf32>
    %c0_27 = arith.constant 0 : index
    %c0_28 = arith.constant 0 : index
    %45 = vector.load %arg10[%c0_27, %c0_28] : memref<32x1xf32, #tpu.memory_space<vmem>>, vector<32x1xf32>
    %46 = vector.broadcast %45 : vector<32x1xf32> to vector<32x128xf32>
    %47 = arith.addf %44, %46 : vector<32x128xf32>
    %48 = vector.extract_strided_slice %47 {offsets = [0, 0], sizes = [16, 128], strides = [1, 1]} : vector<32x128xf32> to vector<16x128xf32>
    %49 = vector.extract_strided_slice %47 {offsets = [16, 0], sizes = [16, 128], strides = [1, 1]} : vector<32x128xf32> to vector<16x128xf32>
    %50 = arith.mulf %48, %49 : vector<16x128xf32>
    %c0_29 = arith.constant 0 : index
    %c0_30 = arith.constant 0 : index
    %51 = vector.load %arg11[%c0_29, %c0_30] : memref<16x16xf32, #tpu.memory_space<vmem>>, vector<16x16xf32>
    %cst_31 = arith.constant dense<0.000000e+00> : vector<16x128xf32>
    %52 = tpu.matmul %51, %50, %cst_31 {dimension_numbers = #tpu.dot_dimension_numbers<[1], [0], [0], [1], [0, 0, 1, 1], [], []>} : vector<16x16xf32>, vector<16x128xf32>, vector<16x128xf32> -> vector<16x128xf32>
    %c0_32 = arith.constant 0 : index
    %c0_33 = arith.constant 0 : index
    %53 = vector.load %arg12[%c0_32, %c0_33] : memref<16x1xf32, #tpu.memory_space<vmem>>, vector<16x1xf32>
    %54 = vector.broadcast %53 : vector<16x1xf32> to vector<16x128xf32>
    %55 = arith.addf %52, %54 : vector<16x128xf32>
    %c0_34 = arith.constant 0 : index
    %c0_35 = arith.constant 0 : index
    %56 = vector.load %arg14[%c0_34, %c0_35] : memref<16x1xf32, #tpu.memory_space<vmem>>, vector<16x1xf32>
    %57 = vector.broadcast %56 : vector<16x1xf32> to vector<16x128xf32>
    %58 = arith.mulf %55, %57 : vector<16x128xf32>
    %59 = arith.addf %16, %58 : vector<16x128xf32>
    %c0_36 = arith.constant 0 : index
    %c0_37 = arith.constant 0 : index
    %c0_38 = arith.constant 0 : index
    %60 = vector.load %arg15[%c0_36, %c0_37, %c0_38] : memref<1x16x128xf32, #tpu.memory_space<vmem>>, vector<1x16x128xf32>
    %61 = vector.shape_cast %60 : vector<1x16x128xf32> to vector<16x128xf32>
    %62 = vector.shape_cast %59 : vector<16x128xf32> to vector<1x16x128xf32>
    tpu.vector_store %arg15[%c0_36, %c0_37, %c0_38], %62 {strides = array<i32>} : memref<1x16x128xf32, #tpu.memory_space<vmem>>, vector<1x16x128xf32>,
    return
  }
  func.func @transform_0(%arg0: i32, %arg1: i32) -> (i32, i32, i32) {
    %c0_i32 = arith.constant 0 : i32
    %c0_i32_0 = arith.constant 0 : i32
    return %arg0, %c0_i32, %arg1 : i32, i32, i32
  }
  func.func @transform_1(%arg0: i32, %arg1: i32) -> (i32, i32, i32) {
    %c0_i32 = arith.constant 0 : i32
    %c0_i32_0 = arith.constant 0 : i32
    return %arg0, %c0_i32, %arg1 : i32, i32, i32
  }
  func.func @transform_2(%arg0: i32, %arg1: i32) -> (i32, i32, i32) {
    %c0_i32 = arith.constant 0 : i32
    %c0_i32_0 = arith.constant 0 : i32
    %c0_i32_1 = arith.constant 0 : i32
    return %arg0, %c0_i32, %c0_i32_0 : i32, i32, i32
  }
  func.func @transform_3(%arg0: i32, %arg1: i32) -> (i32, i32) {
    %c0_i32 = arith.constant 0 : i32
    %c0_i32_0 = arith.constant 0 : i32
    %c0_i32_1 = arith.constant 0 : i32
    return %c0_i32, %c0_i32_0 : i32, i32
  }
  func.func @transform_4(%arg0: i32, %arg1: i32) -> (i32, i32) {
    %c0_i32 = arith.constant 0 : i32
    %c0_i32_0 = arith.constant 0 : i32
    %c0_i32_1 = arith.constant 0 : i32
    return %c0_i32, %c0_i32_0 : i32, i32
  }
  func.func @transform_5(%arg0: i32, %arg1: i32) -> (i32, i32) {
    %c0_i32 = arith.constant 0 : i32
    %c0_i32_0 = arith.constant 0 : i32
    %c0_i32_1 = arith.constant 0 : i32
    return %c0_i32, %c0_i32_0 : i32, i32
  }
  func.func @transform_6(%arg0: i32, %arg1: i32) -> (i32, i32) {
    %c0_i32 = arith.constant 0 : i32
    %c0_i32_0 = arith.constant 0 : i32
    %c0_i32_1 = arith.constant 0 : i32
    return %c0_i32, %c0_i32_0 : i32, i32
  }
  func.func @transform_7(%arg0: i32, %arg1: i32) -> (i32, i32) {
    %c0_i32 = arith.constant 0 : i32
    %c0_i32_0 = arith.constant 0 : i32
    %c0_i32_1 = arith.constant 0 : i32
    return %c0_i32, %c0_i32_0 : i32, i32
  }
  func.func @transform_8(%arg0: i32, %arg1: i32) -> (i32, i32) {
    %c0_i32 = arith.constant 0 : i32
    %c0_i32_0 = arith.constant 0 : i32
    %c0_i32_1 = arith.constant 0 : i32
    return %c0_i32, %c0_i32_0 : i32, i32
  }
  func.func @transform_9(%arg0: i32, %arg1: i32) -> (i32, i32) {
    %c0_i32 = arith.constant 0 : i32
    %c0_i32_0 = arith.constant 0 : i32
    %c0_i32_1 = arith.constant 0 : i32
    return %c0_i32, %c0_i32_0 : i32, i32
  }
  func.func @transform_10(%arg0: i32, %arg1: i32) -> (i32, i32) {
    %c0_i32 = arith.constant 0 : i32
    %c0_i32_0 = arith.constant 0 : i32
    %c0_i32_1 = arith.constant 0 : i32
    return %c0_i32, %c0_i32_0 : i32, i32
  }
  func.func @transform_11(%arg0: i32, %arg1: i32) -> (i32, i32) {
    %c0_i32 = arith.constant 0 : i32
    %c0_i32_0 = arith.constant 0 : i32
    %c0_i32_1 = arith.constant 0 : i32
    return %c0_i32, %c0_i32_0 : i32, i32
  }
  func.func @transform_12(%arg0: i32, %arg1: i32) -> (i32, i32) {
    %c0_i32 = arith.constant 0 : i32
    %c0_i32_0 = arith.constant 0 : i32
    %c0_i32_1 = arith.constant 0 : i32
    return %c0_i32, %c0_i32_0 : i32, i32
  }
  func.func @transform_13(%arg0: i32, %arg1: i32) -> (i32, i32, i32) {
    %c0_i32 = arith.constant 0 : i32
    %c0_i32_0 = arith.constant 0 : i32
    return %arg0, %c0_i32, %arg1 : i32, i32, i32
  }
}

module attributes {stable_mosaic.version = 11 : i64} {
  func.func @_stage1_kernel(%arg0: i32, %arg1: i32, %arg2: memref<1x16x128xf32, #tpu.memory_space<vmem>>, %arg3: memref<1x1x16x16xf32, #tpu.memory_space<vmem>>, %arg4: memref<1x1x16x16xf32, #tpu.memory_space<vmem>>, %arg5: memref<16x1xf32, #tpu.memory_space<vmem>>, %arg6: memref<16x1xf32, #tpu.memory_space<vmem>>, %arg7: memref<32x16xf32, #tpu.memory_space<vmem>>, %arg8: memref<32x1xf32, #tpu.memory_space<vmem>>, %arg9: memref<32x9xf32, #tpu.memory_space<vmem>>, %arg10: memref<32x1xf32, #tpu.memory_space<vmem>>, %arg11: memref<1x16x128xf32, #tpu.memory_space<vmem>>, %arg12: memref<1x1x16x1xf32, #tpu.memory_space<vmem>>) attributes {dimension_semantics = [#tpu.dimension_semantics<parallel>, #tpu.dimension_semantics<parallel>], iteration_bounds = array<i64: 2, 2>, scalar_prefetch = 0 : i64, scratch_operands = 0 : i64, tpu.core_type = #tpu.core_type<tc>, window_params = [{transform_indices = @transform_0, window_bounds = array<i64: 1, 16, 128>}, {transform_indices = @transform_1, window_bounds = array<i64: 1, 1, 16, 16>}, {transform_indices = @transform_2, window_bounds = array<i64: 1, 1, 16, 16>}, {pipeline_mode = #tpu.pipeline_mode<synchronous>, transform_indices = @transform_3, window_bounds = array<i64: 16, 1>}, {pipeline_mode = #tpu.pipeline_mode<synchronous>, transform_indices = @transform_4, window_bounds = array<i64: 16, 1>}, {pipeline_mode = #tpu.pipeline_mode<synchronous>, transform_indices = @transform_5, window_bounds = array<i64: 32, 16>}, {pipeline_mode = #tpu.pipeline_mode<synchronous>, transform_indices = @transform_6, window_bounds = array<i64: 32, 1>}, {pipeline_mode = #tpu.pipeline_mode<synchronous>, transform_indices = @transform_7, window_bounds = array<i64: 32, 9>}, {pipeline_mode = #tpu.pipeline_mode<synchronous>, transform_indices = @transform_8, window_bounds = array<i64: 32, 1>}, {transform_indices = @transform_9, window_bounds = array<i64: 1, 16, 128>}, {transform_indices = @transform_10, window_bounds = array<i64: 1, 1, 16, 1>}]} {
    %c0 = arith.constant 0 : index
    %c0_0 = arith.constant 0 : index
    %c0_1 = arith.constant 0 : index
    %c0_2 = arith.constant 0 : index
    %0 = vector.load %arg3[%c0, %c0_0, %c0_1, %c0_2] : memref<1x1x16x16xf32, #tpu.memory_space<vmem>>, vector<1x1x16x16xf32>
    %1 = vector.shape_cast %0 : vector<1x1x16x16xf32> to vector<16x16xf32>
    %c0_3 = arith.constant 0 : index
    %c0_4 = arith.constant 0 : index
    %c0_5 = arith.constant 0 : index
    %2 = vector.load %arg2[%c0_3, %c0_4, %c0_5] : memref<1x16x128xf32, #tpu.memory_space<vmem>>, vector<1x16x128xf32>
    %3 = vector.shape_cast %2 : vector<1x16x128xf32> to vector<16x128xf32>
    %c0_6 = arith.constant 0 : index
    %c0_7 = arith.constant 0 : index
    %c0_8 = arith.constant 0 : index
    %c0_9 = arith.constant 0 : index
    %4 = vector.load %arg4[%c0_6, %c0_7, %c0_8, %c0_9] : memref<1x1x16x16xf32, #tpu.memory_space<vmem>>, vector<1x1x16x16xf32>
    %5 = vector.shape_cast %4 : vector<1x1x16x16xf32> to vector<16x16xf32>
    %6 = tpu.concatenate %1, %3, %5 in 1 : vector<16x16xf32>, vector<16x128xf32>, vector<16x16xf32> -> vector<16x160xf32>
    %cst = arith.constant dense<0.000000e+00> : vector<160xf32>
    %7 = vector.multi_reduction <add>, %6, %cst [0] : vector<16x160xf32> to vector<160xf32>
    %8 = vector.shape_cast %7 : vector<160xf32> to vector<1x160xf32>
    %cst_10 = arith.constant 1.600000e+01 : f32
    %9 = vector.broadcast %cst_10 : f32 to vector<1x160xf32>
    %10 = arith.divf %8, %9 : vector<1x160xf32>
    %11 = arith.mulf %6, %6 : vector<16x160xf32>
    %cst_11 = arith.constant dense<0.000000e+00> : vector<160xf32>
    %12 = vector.multi_reduction <add>, %11, %cst_11 [0] : vector<16x160xf32> to vector<160xf32>
    %13 = vector.shape_cast %12 : vector<160xf32> to vector<1x160xf32>
    %cst_12 = arith.constant 1.600000e+01 : f32
    %14 = vector.broadcast %cst_12 : f32 to vector<1x160xf32>
    %15 = arith.divf %13, %14 : vector<1x160xf32>
    %16 = arith.mulf %10, %10 : vector<1x160xf32>
    %17 = arith.subf %15, %16 : vector<1x160xf32>
    %cst_13 = arith.constant 0.000000e+00 : f32
    %18 = vector.broadcast %cst_13 : f32 to vector<1x160xf32>
    %19 = arith.maximumf %17, %18 : vector<1x160xf32>
    %20 = vector.broadcast %10 : vector<1x160xf32> to vector<16x160xf32>
    %21 = arith.subf %6, %20 : vector<16x160xf32>
    %cst_14 = arith.constant 9.99999997E-7 : f32
    %22 = vector.broadcast %cst_14 : f32 to vector<1x160xf32>
    %23 = arith.addf %19, %22 : vector<1x160xf32>
    %24 = math.rsqrt %23 : vector<1x160xf32>
    %25 = vector.broadcast %24 : vector<1x160xf32> to vector<16x160xf32>
    %26 = arith.mulf %21, %25 : vector<16x160xf32>
    %c0_15 = arith.constant 0 : index
    %c0_16 = arith.constant 0 : index
    %27 = vector.load %arg5[%c0_15, %c0_16] : memref<16x1xf32, #tpu.memory_space<vmem>>, vector<16x1xf32>
    %28 = vector.broadcast %27 : vector<16x1xf32> to vector<16x160xf32>
    %29 = arith.mulf %26, %28 : vector<16x160xf32>
    %c0_17 = arith.constant 0 : index
    %c0_18 = arith.constant 0 : index
    %30 = vector.load %arg6[%c0_17, %c0_18] : memref<16x1xf32, #tpu.memory_space<vmem>>, vector<16x1xf32>
    %31 = vector.broadcast %30 : vector<16x1xf32> to vector<16x160xf32>
    %32 = arith.addf %29, %31 : vector<16x160xf32>
    %c0_19 = arith.constant 0 : index
    %c0_20 = arith.constant 0 : index
    %33 = vector.load %arg7[%c0_19, %c0_20] : memref<32x16xf32, #tpu.memory_space<vmem>>, vector<32x16xf32>
    %cst_21 = arith.constant dense<0.000000e+00> : vector<32x160xf32>
    %34 = tpu.matmul %33, %32, %cst_21 {dimension_numbers = #tpu.dot_dimension_numbers<[1], [0], [0], [1], [0, 0, 1, 1], [], []>} : vector<32x16xf32>, vector<16x160xf32>, vector<32x160xf32> -> vector<32x160xf32>
    %c0_22 = arith.constant 0 : index
    %c0_23 = arith.constant 0 : index
    %35 = vector.load %arg8[%c0_22, %c0_23] : memref<32x1xf32, #tpu.memory_space<vmem>>, vector<32x1xf32>
    %36 = vector.broadcast %35 : vector<32x1xf32> to vector<32x160xf32>
    %37 = arith.addf %34, %36 : vector<32x160xf32>
    %38 = tpu.iota {dimensions = array<i32: 1>} : vector<1x160xi32>
    %c0_i32 = arith.constant 0 : i32
    %39 = arith.cmpi eq, %arg1, %c0_i32 : i32
    %c16_i32 = arith.constant 16 : i32
    %40 = vector.broadcast %c16_i32 : i32 to vector<1x160xi32>
    %41 = arith.cmpi slt, %38, %40 : vector<1x160xi32>
    %42 = vector.broadcast %39 : i1 to vector<1x160xi1>
    %43 = arith.andi %42, %41 : vector<1x160xi1>
    %cst_24 = arith.constant 0.000000e+00 : f32
    %44 = vector.shape_cast %43 : vector<1x160xi1> to vector<1x160xi1>
    %45 = vector.broadcast %44 : vector<1x160xi1> to vector<32x160xi1>
    %46 = vector.broadcast %cst_24 : f32 to vector<32x160xf32>
    %47 = arith.select %45, %46, %37 : vector<32x160xi1>, vector<32x160xf32>
    %c1_i32 = arith.constant 1 : i32
    %48 = arith.cmpi eq, %arg1, %c1_i32 : i32
    %c144_i32 = arith.constant 144 : i32
    %49 = vector.broadcast %c144_i32 : i32 to vector<1x160xi32>
    %50 = arith.cmpi sge, %38, %49 : vector<1x160xi32>
    %51 = vector.broadcast %48 : i1 to vector<1x160xi1>
    %52 = arith.andi %51, %50 : vector<1x160xi1>
    %cst_25 = arith.constant 0.000000e+00 : f32
    %53 = vector.shape_cast %52 : vector<1x160xi1> to vector<1x160xi1>
    %54 = vector.broadcast %53 : vector<1x160xi1> to vector<32x160xi1>
    %55 = vector.broadcast %cst_25 : f32 to vector<32x160xf32>
    %56 = arith.select %54, %55, %47 : vector<32x160xi1>, vector<32x160xf32>
    %c16_i32_26 = arith.constant 16 : i32
    %c0_i32_27 = arith.constant 0 : i32
    %57 = arith.cmpi eq, %c16_i32_26, %c0_i32_27 : i32
    %c1_i32_28 = arith.constant 1 : i32
    %58 = arith.select %57, %c1_i32_28, %c16_i32_26 : i32
    %59 = vector.broadcast %58 : i32 to vector<1x160xi32>
    %60 = arith.remsi %38, %59 : vector<1x160xi32>
    %c0_i32_29 = arith.constant 0 : i32
    %61 = vector.broadcast %c0_i32_29 : i32 to vector<1x160xi32>
    %62 = arith.cmpi ne, %60, %61 : vector<1x160xi32>
    %c0_i32_30 = arith.constant 0 : i32
    %63 = vector.broadcast %c0_i32_30 : i32 to vector<1x160xi32>
    %64 = arith.cmpi slt, %60, %63 : vector<1x160xi32>
    %c0_i32_31 = arith.constant 0 : i32
    %65 = arith.cmpi slt, %58, %c0_i32_31 : i32
    %66 = vector.broadcast %65 : i1 to vector<1x160xi1>
    %67 = vector.broadcast %66 : vector<1x160xi1> to vector<1x160xi1>
    %68 = arith.xori %64, %67 : vector<1x160xi1>
    %69 = arith.andi %68, %62 : vector<1x160xi1>
    %70 = vector.broadcast %58 : i32 to vector<1x160xi32>
    %71 = arith.addi %60, %70 : vector<1x160xi32>
    %72 = arith.select %69, %71, %60 : vector<1x160xi1>, vector<1x160xi32>
    %cst_32 = arith.constant 0.000000e+00 : f32
    %73 = vector.broadcast %cst_32 : f32 to vector<32x1xf32>
    %c1_i32_33 = arith.constant 1 : i32
    %74 = vector.broadcast %c1_i32_33 : i32 to vector<1x160xi32>
    %75 = arith.cmpi sge, %72, %74 : vector<1x160xi32>
    %76 = vector.extract_strided_slice %56 {offsets = [0, 0], sizes = [32, 159], strides = [1, 1]} : vector<32x160xf32> to vector<32x159xf32>
    %77 = tpu.concatenate %73, %76 in 1 : vector<32x1xf32>, vector<32x159xf32> -> vector<32x160xf32>
    %cst_34 = arith.constant 0.000000e+00 : f32
    %78 = vector.shape_cast %75 : vector<1x160xi1> to vector<1x160xi1>
    %79 = vector.broadcast %78 : vector<1x160xi1> to vector<32x160xi1>
    %80 = vector.broadcast %cst_34 : f32 to vector<32x160xf32>
    %81 = arith.select %79, %77, %80 : vector<32x160xi1>, vector<32x160xf32>
    %c14_i32 = arith.constant 14 : i32
    %82 = vector.broadcast %c14_i32 : i32 to vector<1x160xi32>
    %83 = arith.cmpi sle, %72, %82 : vector<1x160xi32>
    %84 = vector.extract_strided_slice %56 {offsets = [0, 1], sizes = [32, 159], strides = [1, 1]} : vector<32x160xf32> to vector<32x159xf32>
    %85 = tpu.concatenate %84, %73 in 1 : vector<32x159xf32>, vector<32x1xf32> -> vector<32x160xf32>
    %cst_35 = arith.constant 0.000000e+00 : f32
    %86 = vector.shape_cast %83 : vector<1x160xi1> to vector<1x160xi1>
    %87 = vector.broadcast %86 : vector<1x160xi1> to vector<32x160xi1>
    %88 = vector.broadcast %cst_35 : f32 to vector<32x160xf32>
    %89 = arith.select %87, %85, %88 : vector<32x160xi1>, vector<32x160xf32>
    %c0_36 = arith.constant 0 : index
    %c0_37 = arith.constant 0 : index
    %90 = vector.load %arg9[%c0_36, %c0_37] : memref<32x9xf32, #tpu.memory_space<vmem>>, vector<32x9xf32>
    %cst_38 = arith.constant 0.000000e+00 : f32
    %91 = vector.broadcast %cst_38 : f32 to vector<32x128xf32>
    %92 = vector.extract_strided_slice %81 {offsets = [0, 0], sizes = [32, 128], strides = [1, 1]} : vector<32x160xf32> to vector<32x128xf32>
    %93 = vector.extract_strided_slice %90 {offsets = [0, 0], sizes = [32, 1], strides = [1, 1]} : vector<32x9xf32> to vector<32x1xf32>
    %94 = vector.broadcast %93 : vector<32x1xf32> to vector<32x128xf32>
    %95 = arith.mulf %92, %94 : vector<32x128xf32>
    %96 = arith.addf %91, %95 : vector<32x128xf32>
    %97 = vector.extract_strided_slice %56 {offsets = [0, 0], sizes = [32, 128], strides = [1, 1]} : vector<32x160xf32> to vector<32x128xf32>
    %98 = vector.extract_strided_slice %90 {offsets = [0, 1], sizes = [32, 1], strides = [1, 1]} : vector<32x9xf32> to vector<32x1xf32>
    %99 = vector.broadcast %98 : vector<32x1xf32> to vector<32x128xf32>
    %100 = arith.mulf %97, %99 : vector<32x128xf32>
    %101 = arith.addf %96, %100 : vector<32x128xf32>
    %102 = vector.extract_strided_slice %89 {offsets = [0, 0], sizes = [32, 128], strides = [1, 1]} : vector<32x160xf32> to vector<32x128xf32>
    %103 = vector.extract_strided_slice %90 {offsets = [0, 2], sizes = [32, 1], strides = [1, 1]} : vector<32x9xf32> to vector<32x1xf32>
    %104 = vector.broadcast %103 : vector<32x1xf32> to vector<32x128xf32>
    %105 = arith.mulf %102, %104 : vector<32x128xf32>
    %106 = arith.addf %101, %105 : vector<32x128xf32>
    %107 = vector.extract_strided_slice %81 {offsets = [0, 16], sizes = [32, 128], strides = [1, 1]} : vector<32x160xf32> to vector<32x128xf32>
    %108 = vector.extract_strided_slice %90 {offsets = [0, 3], sizes = [32, 1], strides = [1, 1]} : vector<32x9xf32> to vector<32x1xf32>
    %109 = vector.broadcast %108 : vector<32x1xf32> to vector<32x128xf32>
    %110 = arith.mulf %107, %109 : vector<32x128xf32>
    %111 = arith.addf %106, %110 : vector<32x128xf32>
    %112 = vector.extract_strided_slice %56 {offsets = [0, 16], sizes = [32, 128], strides = [1, 1]} : vector<32x160xf32> to vector<32x128xf32>
    %113 = vector.extract_strided_slice %90 {offsets = [0, 4], sizes = [32, 1], strides = [1, 1]} : vector<32x9xf32> to vector<32x1xf32>
    %114 = vector.broadcast %113 : vector<32x1xf32> to vector<32x128xf32>
    %115 = arith.mulf %112, %114 : vector<32x128xf32>
    %116 = arith.addf %111, %115 : vector<32x128xf32>
    %117 = vector.extract_strided_slice %89 {offsets = [0, 16], sizes = [32, 128], strides = [1, 1]} : vector<32x160xf32> to vector<32x128xf32>
    %118 = vector.extract_strided_slice %90 {offsets = [0, 5], sizes = [32, 1], strides = [1, 1]} : vector<32x9xf32> to vector<32x1xf32>
    %119 = vector.broadcast %118 : vector<32x1xf32> to vector<32x128xf32>
    %120 = arith.mulf %117, %119 : vector<32x128xf32>
    %121 = arith.addf %116, %120 : vector<32x128xf32>
    %122 = vector.extract_strided_slice %81 {offsets = [0, 32], sizes = [32, 128], strides = [1, 1]} : vector<32x160xf32> to vector<32x128xf32>
    %123 = vector.extract_strided_slice %90 {offsets = [0, 6], sizes = [32, 1], strides = [1, 1]} : vector<32x9xf32> to vector<32x1xf32>
    %124 = vector.broadcast %123 : vector<32x1xf32> to vector<32x128xf32>
    %125 = arith.mulf %122, %124 : vector<32x128xf32>
    %126 = arith.addf %121, %125 : vector<32x128xf32>
    %127 = vector.extract_strided_slice %56 {offsets = [0, 32], sizes = [32, 128], strides = [1, 1]} : vector<32x160xf32> to vector<32x128xf32>
    %128 = vector.extract_strided_slice %90 {offsets = [0, 7], sizes = [32, 1], strides = [1, 1]} : vector<32x9xf32> to vector<32x1xf32>
    %129 = vector.broadcast %128 : vector<32x1xf32> to vector<32x128xf32>
    %130 = arith.mulf %127, %129 : vector<32x128xf32>
    %131 = arith.addf %126, %130 : vector<32x128xf32>
    %132 = vector.extract_strided_slice %89 {offsets = [0, 32], sizes = [32, 128], strides = [1, 1]} : vector<32x160xf32> to vector<32x128xf32>
    %133 = vector.extract_strided_slice %90 {offsets = [0, 8], sizes = [32, 1], strides = [1, 1]} : vector<32x9xf32> to vector<32x1xf32>
    %134 = vector.broadcast %133 : vector<32x1xf32> to vector<32x128xf32>
    %135 = arith.mulf %132, %134 : vector<32x128xf32>
    %136 = arith.addf %131, %135 : vector<32x128xf32>
    %c0_39 = arith.constant 0 : index
    %c0_40 = arith.constant 0 : index
    %137 = vector.load %arg10[%c0_39, %c0_40] : memref<32x1xf32, #tpu.memory_space<vmem>>, vector<32x1xf32>
    %138 = vector.broadcast %137 : vector<32x1xf32> to vector<32x128xf32>
    %139 = arith.addf %136, %138 : vector<32x128xf32>
    %140 = vector.extract_strided_slice %139 {offsets = [0, 0], sizes = [16, 128], strides = [1, 1]} : vector<32x128xf32> to vector<16x128xf32>
    %141 = vector.extract_strided_slice %139 {offsets = [16, 0], sizes = [16, 128], strides = [1, 1]} : vector<32x128xf32> to vector<16x128xf32>
    %142 = arith.mulf %140, %141 : vector<16x128xf32>
    %c0_41 = arith.constant 0 : index
    %c0_42 = arith.constant 0 : index
    %c0_43 = arith.constant 0 : index
    %143 = vector.load %arg11[%c0_41, %c0_42, %c0_43] : memref<1x16x128xf32, #tpu.memory_space<vmem>>, vector<1x16x128xf32>
    %144 = vector.shape_cast %143 : vector<1x16x128xf32> to vector<16x128xf32>
    %145 = vector.shape_cast %142 : vector<16x128xf32> to vector<1x16x128xf32>
    tpu.vector_store %arg11[%c0_41, %c0_42, %c0_43], %145 {strides = array<i32>} : memref<1x16x128xf32, #tpu.memory_space<vmem>>, vector<1x16x128xf32>,
    %cst_44 = arith.constant dense<0.000000e+00> : vector<16xf32>
    %146 = vector.multi_reduction <add>, %142, %cst_44 [1] : vector<16x128xf32> to vector<16xf32>
    %147 = vector.shape_cast %146 : vector<16xf32> to vector<16x1xf32>
    %c0_45 = arith.constant 0 : index
    %c0_46 = arith.constant 0 : index
    %c0_47 = arith.constant 0 : index
    %c0_48 = arith.constant 0 : index
    %148 = vector.load %arg12[%c0_45, %c0_46, %c0_47, %c0_48] : memref<1x1x16x1xf32, #tpu.memory_space<vmem>>, vector<1x1x16x1xf32>
    %149 = vector.shape_cast %148 : vector<1x1x16x1xf32> to vector<16x1xf32>
    %150 = vector.shape_cast %147 : vector<16x1xf32> to vector<1x1x16x1xf32>
    tpu.vector_store %arg12[%c0_45, %c0_46, %c0_47, %c0_48], %150 {strides = array<i32>} : memref<1x1x16x1xf32, #tpu.memory_space<vmem>>, vector<1x1x16x1xf32>,
    return
  }
  func.func @transform_0(%arg0: i32, %arg1: i32) -> (i32, i32, i32) {
    %c0_i32 = arith.constant 0 : i32
    %c0_i32_0 = arith.constant 0 : i32
    return %arg0, %c0_i32, %arg1 : i32, i32, i32
  }
  func.func @transform_1(%arg0: i32, %arg1: i32) -> (i32, i32, i32, i32) {
    %c0_i32 = arith.constant 0 : i32
    %c0_i32_0 = arith.constant 0 : i32
    %c0_i32_1 = arith.constant 0 : i32
    return %arg0, %arg1, %c0_i32, %c0_i32_0 : i32, i32, i32, i32
  }
  func.func @transform_2(%arg0: i32, %arg1: i32) -> (i32, i32, i32, i32) {
    %c0_i32 = arith.constant 0 : i32
    %c0_i32_0 = arith.constant 0 : i32
    %c0_i32_1 = arith.constant 0 : i32
    return %arg0, %arg1, %c0_i32, %c0_i32_0 : i32, i32, i32, i32
  }
  func.func @transform_3(%arg0: i32, %arg1: i32) -> (i32, i32) {
    %c0_i32 = arith.constant 0 : i32
    %c0_i32_0 = arith.constant 0 : i32
    %c0_i32_1 = arith.constant 0 : i32
    return %c0_i32, %c0_i32_0 : i32, i32
  }
  func.func @transform_4(%arg0: i32, %arg1: i32) -> (i32, i32) {
    %c0_i32 = arith.constant 0 : i32
    %c0_i32_0 = arith.constant 0 : i32
    %c0_i32_1 = arith.constant 0 : i32
    return %c0_i32, %c0_i32_0 : i32, i32
  }
  func.func @transform_5(%arg0: i32, %arg1: i32) -> (i32, i32) {
    %c0_i32 = arith.constant 0 : i32
    %c0_i32_0 = arith.constant 0 : i32
    %c0_i32_1 = arith.constant 0 : i32
    return %c0_i32, %c0_i32_0 : i32, i32
  }
  func.func @transform_6(%arg0: i32, %arg1: i32) -> (i32, i32) {
    %c0_i32 = arith.constant 0 : i32
    %c0_i32_0 = arith.constant 0 : i32
    %c0_i32_1 = arith.constant 0 : i32
    return %c0_i32, %c0_i32_0 : i32, i32
  }
  func.func @transform_7(%arg0: i32, %arg1: i32) -> (i32, i32) {
    %c0_i32 = arith.constant 0 : i32
    %c0_i32_0 = arith.constant 0 : i32
    %c0_i32_1 = arith.constant 0 : i32
    return %c0_i32, %c0_i32_0 : i32, i32
  }
  func.func @transform_8(%arg0: i32, %arg1: i32) -> (i32, i32) {
    %c0_i32 = arith.constant 0 : i32
    %c0_i32_0 = arith.constant 0 : i32
    %c0_i32_1 = arith.constant 0 : i32
    return %c0_i32, %c0_i32_0 : i32, i32
  }
  func.func @transform_9(%arg0: i32, %arg1: i32) -> (i32, i32, i32) {
    %c0_i32 = arith.constant 0 : i32
    %c0_i32_0 = arith.constant 0 : i32
    return %arg0, %c0_i32, %arg1 : i32, i32, i32
  }
  func.func @transform_10(%arg0: i32, %arg1: i32) -> (i32, i32, i32, i32) {
    %c0_i32 = arith.constant 0 : i32
    %c0_i32_0 = arith.constant 0 : i32
    %c0_i32_1 = arith.constant 0 : i32
    return %arg0, %arg1, %c0_i32, %c0_i32_0 : i32, i32, i32, i32
  }
}

</mosaic_0001>

<llo_original>
// kernel: nafblock_forward.3
$region0: #{nafblock_forward.3}
  #allocation0 [shape = 'u32[]', space=smem, size = 0x4, offset = 0x4, fixed_abs, tag = 'smem constant byte address 0x4 - core index']
  #allocation1 [shape = 'u32[72,128]{1,0:T(1,128)}', space=vmem, size = 0x9000, scoped, tag = 'internal scratch']
  %s0 = inlined_call_operand.vmem [shape: f32[2,16,256], index: 0, kind: input, shape index: {}]
  %s1 = inlined_call_operand.vmem [shape: f32[2,16,256], index: 1, kind: input, shape index: {}]
  %s2 = inlined_call_operand.vmem [shape: f32[2,16,1], index: 2, kind: input, shape index: {}]
  %s3 = inlined_call_operand.vmem [shape: f32[16,16], index: 3, kind: input, shape index: {}]
  %s4 = inlined_call_operand.vmem [shape: f32[16,1], index: 4, kind: input, shape index: {}]
  %s5 = inlined_call_operand.vmem [shape: f32[16,1], index: 5, kind: input, shape index: {}]
  %s6 = inlined_call_operand.vmem [shape: f32[16,1], index: 6, kind: input, shape index: {}]
  %s7 = inlined_call_operand.vmem [shape: f32[32,16], index: 7, kind: input, shape index: {}]
  %s8 = inlined_call_operand.vmem [shape: f32[32,1], index: 8, kind: input, shape index: {}]
  %s9 = inlined_call_operand.vmem [shape: f32[16,16], index: 9, kind: input, shape index: {}]
  %s10 = inlined_call_operand.vmem [shape: f32[16,1], index: 10, kind: input, shape index: {}]
  %s11 = inlined_call_operand.vmem [shape: f32[16,1], index: 11, kind: input, shape index: {}]
  %s12 = inlined_call_operand.vmem [shape: f32[16,1], index: 12, kind: input, shape index: {}]
  %s13 = inlined_call_operand.vmem [shape: f32[2,16,256], index: 13, kind: output, shape index: {}]
  %s14 = sld [smem:[#allocation0]]
  $region195: #{nafblock_forward.3} parent=0
    _
  %s16 = ssub.s32 1, %s14
  %s17 = scalar_select 0, %s16, %s14
  $region1: #{nafblock_forward.3} parent=0
    #allocation2 [shape = 'u8[16384]{0}', space=vmem, size = 0x4000, scoped, tag = 'input window, operand 0']
    #allocation3 [shape = 'u8[16384]{0}', space=vmem, size = 0x4000, scoped, tag = 'input window, operand 1']
    #allocation4 [shape = 'u8[16384]{0}', space=vmem, size = 0x4000, scoped, tag = 'output window, operand 0']
    loop: start=0, step=1, limit=6
    $region2: #{nafblock_forward.3} parent=1 // loop_pre_header
      _
    $region3: #{nafblock_forward.3} parent=1 // loop_header
      %s19 = sphi 0, %s23
      %p20 = scmp.ge.s32.totalorder %s19, 6
      %s26 = sphi 0, %s38
      %s27 = sphi 0, %s34
      %s28 = sphi 0, %s26
      %s29 = sphi 0, %s27
      %s30 = sphi 0, %s28
      %s31 = sphi 0, %s29
      %s43 = sphi 0, %s45
      %s46 = sphi 0, %s43
      %s47 = sphi 0, %s46
      %s63 = sphi 0, %s47
      %s71 = sphi 0, %s73
      %s74 = sphi 0, %s71
      %s75 = sphi 0, %s74
      %s91 = sphi 0, %s75
      %s97 = sphi 0, %s99
      %s100 = sphi 0, %s97
      %s101 = sphi 0, %s100
      %s117 = sphi 0, %s101
      %s121 = sphi 0, %s121
      %s123 = sphi 0, %s121
      %s124 = sphi 0, %s123
      %s138 = sphi 0, %s124
      %s142 = sphi 0, %s142
      %s144 = sphi 0, %s142
      %s145 = sphi 0, %s144
      %s159 = sphi 0, %s145
      %s163 = sphi 0, %s163
      %s165 = sphi 0, %s163
      %s166 = sphi 0, %s165
      %s180 = sphi 0, %s166
      %s184 = sphi 0, %s184
      %s186 = sphi 0, %s184
      %s187 = sphi 0, %s186
      %s201 = sphi 0, %s187
      %s205 = sphi 0, %s205
      %s207 = sphi 0, %s205
      %s208 = sphi 0, %s207
      %s222 = sphi 0, %s208
      %s226 = sphi 0, %s226
      %s228 = sphi 0, %s226
      %s229 = sphi 0, %s228
      %s243 = sphi 0, %s229
      %s247 = sphi 0, %s247
      %s249 = sphi 0, %s247
      %s250 = sphi 0, %s249
      %s264 = sphi 0, %s250
      %s268 = sphi 0, %s268
      %s270 = sphi 0, %s268
      %s271 = sphi 0, %s270
      %s285 = sphi 0, %s271
      %s289 = sphi 0, %s289
      %s291 = sphi 0, %s289
      %s292 = sphi 0, %s291
      %s306 = sphi 0, %s292
      %s310 = sphi 0, %s310
      %s312 = sphi 0, %s310
      %s313 = sphi 0, %s312
      %s327 = sphi 0, %s313
      %s335 = sphi 0, %s337
      %s338 = sphi 0, %s335
      %s339 = sphi 0, %s338
      %s355 = sphi 0, %s339
    $region4: #{nafblock_forward.3} parent=1 // loop_header_branch
      %22 = sbr.rel (%p20) target = $region8
    $region5: #{nafblock_forward.3} parent=1 // loop_body
      %s24 = ssub.s32 %s19, 1
      %s25 = ssub.s32 %s19, 2
      %s32 = sadd.s32 1, %s27
      %p33 = scmp.ge.s32.totalorder %s32, 2
      %s34 = scalar_select %p33, 0, %s32
      %s35 = sadd.s32 1, %s26
      %s36 = scalar_select %p33, %s35, %s26
      %p37 = scmp.ge.s32.totalorder %s36, 2
      %s38 = scalar_select %p37, 0, %s36
      %s39 = ssub.s32 %s26, %s38
      %s40 = ssub.s32 %s27, %s34
      %s41 = sor.u32 %s39, %s40
      %p42 = scmp.eq.s32.totalorder %s41, 0
      %s44 = sadd.s32 %s43, 1
      %s45 = scalar_select %p42, %s43, %s44
      %p48 = pneg %p42
      %p49 = scmp.eq.s32.totalorder %s19, 3
      %p50 = por %p48, %p49
      %p51 = scmp.ne.s32.totalorder %s43, %s46
      %p52 = scmp.eq.s32.totalorder %s19, 0
      %p53 = por %p51, %p52
      %p54 = scmp.ne.s32.totalorder %s43, %s46
      %p55 = scmp.eq.s32.totalorder %s24, 3
      %p56 = por %p54, %p55
      %p57 = scmp.ne.s32.totalorder %s46, %s47
      %p58 = scmp.eq.s32.totalorder %s24, 0
      %p59 = por %p57, %p58
      %p60 = scmp.ne.s32.totalorder %s46, %s47
      %p61 = scmp.eq.s32.totalorder %s25, 3
      %p62 = por %p60, %p61
      %p64 = scmp.ne.s32.totalorder %s47, %s63
      %p65 = scmp.eq.s32.totalorder %s25, 0
      %p66 = por %p64, %p65
      %s67 = ssub.s32 %s26, %s38
      %s68 = ssub.s32 %s27, %s34
      %s69 = sor.u32 %s67, %s68
      %p70 = scmp.eq.s32.totalorder %s69, 0
      %s72 = sadd.s32 %s71, 1
      %s73 = scalar_select %p70, %s71, %s72
      %p76 = pneg %p70
      %p77 = scmp.eq.s32.totalorder %s19, 3
      %p78 = por %p76, %p77
      %p79 = scmp.ne.s32.totalorder %s71, %s74
      %p80 = scmp.eq.s32.totalorder %s19, 0
      %p81 = por %p79, %p80
      %p82 = scmp.ne.s32.totalorder %s71, %s74
      %p83 = scmp.eq.s32.totalorder %s24, 3
      %p84 = por %p82, %p83
      %p85 = scmp.ne.s32.totalorder %s74, %s75
      %p86 = scmp.eq.s32.totalorder %s24, 0
      %p87 = por %p85, %p86
      %p88 = scmp.ne.s32.totalorder %s74, %s75
      %p89 = scmp.eq.s32.totalorder %s25, 3
      %p90 = por %p88, %p89
      %p92 = scmp.ne.s32.totalorder %s75, %s91
      %p93 = scmp.eq.s32.totalorder %s25, 0
      %p94 = por %p92, %p93
      %s95 = ssub.s32 %s26, %s38
      %p96 = scmp.eq.s32.totalorder %s95, 0
      %s98 = sadd.s32 %s97, 1
      %s99 = scalar_select %p96, %s97, %s98
      %p102 = pneg %p96
      %p103 = scmp.eq.s32.totalorder %s19, 3
      %p104 = por %p102, %p103
      %p105 = scmp.ne.s32.totalorder %s97, %s100
      %p106 = scmp.eq.s32.totalorder %s19, 0
      %p107 = por %p105, %p106
      %p108 = scmp.ne.s32.totalorder %s97, %s100
      %p109 = scmp.eq.s32.totalorder %s24, 3
      %p110 = por %p108, %p109
      %p111 = scmp.ne.s32.totalorder %s100, %s101
      %p112 = scmp.eq.s32.totalorder %s24, 0
      %p113 = por %p111, %p112
      %p114 = scmp.ne.s32.totalorder %s100, %s101
      %p115 = scmp.eq.s32.totalorder %s25, 3
      %p116 = por %p114, %p115
      %p118 = scmp.ne.s32.totalorder %s101, %s117
      %p119 = scmp.eq.s32.totalorder %s25, 0
      %p120 = por %p118, %p119
      %s122 = sadd.s32 %s121, 1
      %p125 = scmp.eq.s32.totalorder %s19, 3
      %p126 = scmp.ne.s32.totalorder %s121, %s123
      %p127 = scmp.eq.s32.totalorder %s19, 0
      %p128 = por %p126, %p127
      %p129 = scmp.ne.s32.totalorder %s121, %s123
      %p130 = scmp.eq.s32.totalorder %s24, 3
      %p131 = por %p129, %p130
      %p132 = scmp.ne.s32.totalorder %s123, %s124
      %p133 = scmp.eq.s32.totalorder %s24, 0
      %p134 = por %p132, %p133
      %p135 = scmp.ne.s32.totalorder %s123, %s124
      %p136 = scmp.eq.s32.totalorder %s25, 3
      %p137 = por %p135, %p136
      %p139 = scmp.ne.s32.totalorder %s124, %s138
      %p140 = scmp.eq.s32.totalorder %s25, 0
      %p141 = por %p139, %p140
      %s143 = sadd.s32 %s142, 1
      %p146 = scmp.eq.s32.totalorder %s19, 3
      %p147 = scmp.ne.s32.totalorder %s142, %s144
      %p148 = scmp.eq.s32.totalorder %s19, 0
      %p149 = por %p147, %p148
      %p150 = scmp.ne.s32.totalorder %s142, %s144
      %p151 = scmp.eq.s32.totalorder %s24, 3
      %p152 = por %p150, %p151
      %p153 = scmp.ne.s32.totalorder %s144, %s145
      %p154 = scmp.eq.s32.totalorder %s24, 0
      %p155 = por %p153, %p154
      %p156 = scmp.ne.s32.totalorder %s144, %s145
      %p157 = scmp.eq.s32.totalorder %s25, 3
      %p158 = por %p156, %p157
      %p160 = scmp.ne.s32.totalorder %s145, %s159
      %p161 = scmp.eq.s32.totalorder %s25, 0
      %p162 = por %p160, %p161
      %s164 = sadd.s32 %s163, 1
      %p167 = scmp.eq.s32.totalorder %s19, 3
      %p168 = scmp.ne.s32.totalorder %s163, %s165
      %p169 = scmp.eq.s32.totalorder %s19, 0
      %p170 = por %p168, %p169
      %p171 = scmp.ne.s32.totalorder %s163, %s165
      %p172 = scmp.eq.s32.totalorder %s24, 3
      %p173 = por %p171, %p172
      %p174 = scmp.ne.s32.totalorder %s165, %s166
      %p175 = scmp.eq.s32.totalorder %s24, 0
      %p176 = por %p174, %p175
      %p177 = scmp.ne.s32.totalorder %s165, %s166
      %p178 = scmp.eq.s32.totalorder %s25, 3
      %p179 = por %p177, %p178
      %p181 = scmp.ne.s32.totalorder %s166, %s180
      %p182 = scmp.eq.s32.totalorder %s25, 0
      %p183 = por %p181, %p182
      %s185 = sadd.s32 %s184, 1
      %p188 = scmp.eq.s32.totalorder %s19, 3
      %p189 = scmp.ne.s32.totalorder %s184, %s186
      %p190 = scmp.eq.s32.totalorder %s19, 0
      %p191 = por %p189, %p190
      %p192 = scmp.ne.s32.totalorder %s184, %s186
      %p193 = scmp.eq.s32.totalorder %s24, 3
      %p194 = por %p192, %p193
      %p195 = scmp.ne.s32.totalorder %s186, %s187
      %p196 = scmp.eq.s32.totalorder %s24, 0
      %p197 = por %p195, %p196
      %p198 = scmp.ne.s32.totalorder %s186, %s187
      %p199 = scmp.eq.s32.totalorder %s25, 3
      %p200 = por %p198, %p199
      %p202 = scmp.ne.s32.totalorder %s187, %s201
      %p203 = scmp.eq.s32.totalorder %s25, 0
      %p204 = por %p202, %p203
      %s206 = sadd.s32 %s205, 1
      %p209 = scmp.eq.s32.totalorder %s19, 3
      %p210 = scmp.ne.s32.totalorder %s205, %s207
      %p211 = scmp.eq.s32.totalorder %s19, 0
      %p212 = por %p210, %p211
      %p213 = scmp.ne.s32.totalorder %s205, %s207
      %p214 = scmp.eq.s32.totalorder %s24, 3
      %p215 = por %p213, %p214
      %p216 = scmp.ne.s32.totalorder %s207, %s208
      %p217 = scmp.eq.s32.totalorder %s24, 0
      %p218 = por %p216, %p217
      %p219 = scmp.ne.s32.totalorder %s207, %s208
      %p220 = scmp.eq.s32.totalorder %s25, 3
      %p221 = por %p219, %p220
      %p223 = scmp.ne.s32.totalorder %s208, %s222
      %p224 = scmp.eq.s32.totalorder %s25, 0
      %p225 = por %p223, %p224
      %s227 = sadd.s32 %s226, 1
      %p230 = scmp.eq.s32.totalorder %s19, 3
      %p231 = scmp.ne.s32.totalorder %s226, %s228
      %p232 = scmp.eq.s32.totalorder %s19, 0
      %p233 = por %p231, %p232
      %p234 = scmp.ne.s32.totalorder %s226, %s228
      %p235 = scmp.eq.s32.totalorder %s24, 3
      %p236 = por %p234, %p235
      %p237 = scmp.ne.s32.totalorder %s228, %s229
      %p238 = scmp.eq.s32.totalorder %s24, 0
      %p239 = por %p237, %p238
      %p240 = scmp.ne.s32.totalorder %s228, %s229
      %p241 = scmp.eq.s32.totalorder %s25, 3
      %p242 = por %p240, %p241
      %p244 = scmp.ne.s32.totalorder %s229, %s243
      %p245 = scmp.eq.s32.totalorder %s25, 0
      %p246 = por %p244, %p245
      %s248 = sadd.s32 %s247, 1
      %p251 = scmp.eq.s32.totalorder %s19, 3
      %p252 = scmp.ne.s32.totalorder %s247, %s249
      %p253 = scmp.eq.s32.totalorder %s19, 0
      %p254 = por %p252, %p253
      %p255 = scmp.ne.s32.totalorder %s247, %s249
      %p256 = scmp.eq.s32.totalorder %s24, 3
      %p257 = por %p255, %p256
      %p258 = scmp.ne.s32.totalorder %s249, %s250
      %p259 = scmp.eq.s32.totalorder %s24, 0
      %p260 = por %p258, %p259
      %p261 = scmp.ne.s32.totalorder %s249, %s250
      %p262 = scmp.eq.s32.totalorder %s25, 3
      %p263 = por %p261, %p262
      %p265 = scmp.ne.s32.totalorder %s250, %s264
      %p266 = scmp.eq.s32.totalorder %s25, 0
      %p267 = por %p265, %p266
      %s269 = sadd.s32 %s268, 1
      %p272 = scmp.eq.s32.totalorder %s19, 3
      %p273 = scmp.ne.s32.totalorder %s268, %s270
      %p274 = scmp.eq.s32.totalorder %s19, 0
      %p275 = por %p273, %p274
      %p276 = scmp.ne.s32.totalorder %s268, %s270
      %p277 = scmp.eq.s32.totalorder %s24, 3
      %p278 = por %p276, %p277
      %p279 = scmp.ne.s32.totalorder %s270, %s271
      %p280 = scmp.eq.s32.totalorder %s24, 0
      %p281 = por %p279, %p280
      %p282 = scmp.ne.s32.totalorder %s270, %s271
      %p283 = scmp.eq.s32.totalorder %s25, 3
      %p284 = por %p282, %p283
      %p286 = scmp.ne.s32.totalorder %s271, %s285
      %p287 = scmp.eq.s32.totalorder %s25, 0
      %p288 = por %p286, %p287
      %s290 = sadd.s32 %s289, 1
      %p293 = scmp.eq.s32.totalorder %s19, 3
      %p294 = scmp.ne.s32.totalorder %s289, %s291
      %p295 = scmp.eq.s32.totalorder %s19, 0
      %p296 = por %p294, %p295
      %p297 = scmp.ne.s32.totalorder %s289, %s291
      %p298 = scmp.eq.s32.totalorder %s24, 3
      %p299 = por %p297, %p298
      %p300 = scmp.ne.s32.totalorder %s291, %s292
      %p301 = scmp.eq.s32.totalorder %s24, 0
      %p302 = por %p300, %p301
      %p303 = scmp.ne.s32.totalorder %s291, %s292
      %p304 = scmp.eq.s32.totalorder %s25, 3
      %p305 = por %p303, %p304
      %p307 = scmp.ne.s32.totalorder %s292, %s306
      %p308 = scmp.eq.s32.totalorder %s25, 0
      %p309 = por %p307, %p308
      %s311 = sadd.s32 %s310, 1
      %p314 = scmp.eq.s32.totalorder %s19, 3
      %p315 = scmp.ne.s32.totalorder %s310, %s312
      %p316 = scmp.eq.s32.totalorder %s19, 0
      %p317 = por %p315, %p316
      %p318 = scmp.ne.s32.totalorder %s310, %s312
      %p319 = scmp.eq.s32.totalorder %s24, 3
      %p320 = por %p318, %p319
      %p321 = scmp.ne.s32.totalorder %s312, %s313
      %p322 = scmp.eq.s32.totalorder %s24, 0
      %p323 = por %p321, %p322
      %p324 = scmp.ne.s32.totalorder %s312, %s313
      %p325 = scmp.eq.s32.totalorder %s25, 3
      %p326 = por %p324, %p325
      %p328 = scmp.ne.s32.totalorder %s313, %s327
      %p329 = scmp.eq.s32.totalorder %s25, 0
      %p330 = por %p328, %p329
      %s331 = ssub.s32 %s26, %s38
      %s332 = ssub.s32 %s27, %s34
      %s333 = sor.u32 %s331, %s332
      %p334 = scmp.eq.s32.totalorder %s333, 0
      %s336 = sadd.s32 %s335, 1
      %s337 = scalar_select %p334, %s335, %s336
      %p340 = pneg %p334
      %p341 = scmp.eq.s32.totalorder %s19, 3
      %p342 = por %p340, %p341
      %p343 = scmp.ne.s32.totalorder %s335, %s338
      %p344 = scmp.eq.s32.totalorder %s19, 0
      %p345 = por %p343, %p344
      %p346 = scmp.ne.s32.totalorder %s335, %s338
      %p347 = scmp.eq.s32.totalorder %s24, 3
      %p348 = por %p346, %p347
      %p349 = scmp.ne.s32.totalorder %s338, %s339
      %p350 = scmp.eq.s32.totalorder %s24, 0
      %p351 = por %p349, %p350
      %p352 = scmp.ne.s32.totalorder %s338, %s339
      %p353 = scmp.eq.s32.totalorder %s25, 3
      %p354 = por %p352, %p353
      %p356 = scmp.ne.s32.totalorder %s339, %s355
      %p357 = scmp.eq.s32.totalorder %s25, 0
      %p358 = por %p356, %p357
      %p359 = scmp.le.s32.totalorder 1, %s19
      %p360 = scmp.lt.s32.totalorder %s19, 5
      %p361 = pnand %p359, %p360
      %p362 = pneg %p361
      // Predicated region
      $region9: #{nafblock_forward.3} parent=5 // pred_check
        _
      $region10: #{nafblock_forward.3} parent=5 // pred_check_branch
        %364 = sbr.rel (%p361) target = $region12
      $region11: #{nafblock_forward.3} parent=5 // pred_region
        %s365 = ssub.s32 %s19, 1
        // Predicated region
        $region13: #{nafblock_forward.3} parent=11 // pred_check
          %p366 = pneg %p134
        $region14: #{nafblock_forward.3} parent=11 // pred_check_branch
          %368 = sbr.rel (%p366) target = $region16
        $region15: #{nafblock_forward.3} parent=11 // pred_region
          _
        $region16: #{nafblock_forward.3} parent=11 // pred_fallthru
          _
        // Predicated region
        $region17: #{nafblock_forward.3} parent=11 // pred_check
          %p369 = pneg %p155
        $region18: #{nafblock_forward.3} parent=11 // pred_check_branch
          %371 = sbr.rel (%p369) target = $region20
        $region19: #{nafblock_forward.3} parent=11 // pred_region
          _
        $region20: #{nafblock_forward.3} parent=11 // pred_fallthru
          _
        // Predicated region
        $region21: #{nafblock_forward.3} parent=11 // pred_check
          %p372 = pneg %p176
        $region22: #{nafblock_forward.3} parent=11 // pred_check_branch
          %374 = sbr.rel (%p372) target = $region24
        $region23: #{nafblock_forward.3} parent=11 // pred_region
          _
        $region24: #{nafblock_forward.3} parent=11 // pred_fallthru
          _
        // Predicated region
        $region25: #{nafblock_forward.3} parent=11 // pred_check
          %p375 = pneg %p197
        $region26: #{nafblock_forward.3} parent=11 // pred_check_branch
          %377 = sbr.rel (%p375) target = $region28
        $region27: #{nafblock_forward.3} parent=11 // pred_region
          _
        $region28: #{nafblock_forward.3} parent=11 // pred_fallthru
          _
        // Predicated region
        $region29: #{nafblock_forward.3} parent=11 // pred_check
          %p378 = pneg %p218
        $region30: #{nafblock_forward.3} parent=11 // pred_check_branch
          %380 = sbr.rel (%p378) target = $region32
        $region31: #{nafblock_forward.3} parent=11 // pred_region
          _
        $region32: #{nafblock_forward.3} parent=11 // pred_fallthru
          _
        // Predicated region
        $region33: #{nafblock_forward.3} parent=11 // pred_check
          %p381 = pneg %p239
        $region34: #{nafblock_forward.3} parent=11 // pred_check_branch
          %383 = sbr.rel (%p381) target = $region36
        $region35: #{nafblock_forward.3} parent=11 // pred_region
          _
        $region36: #{nafblock_forward.3} parent=11 // pred_fallthru
          _
        // Predicated region
        $region37: #{nafblock_forward.3} parent=11 // pred_check
          %p384 = pneg %p260
        $region38: #{nafblock_forward.3} parent=11 // pred_check_branch
          %386 = sbr.rel (%p384) target = $region40
        $region39: #{nafblock_forward.3} parent=11 // pred_region
          _
        $region40: #{nafblock_forward.3} parent=11 // pred_fallthru
          _
        // Predicated region
        $region41: #{nafblock_forward.3} parent=11 // pred_check
          %p387 = pneg %p281
        $region42: #{nafblock_forward.3} parent=11 // pred_check_branch
          %389 = sbr.rel (%p387) target = $region44
        $region43: #{nafblock_forward.3} parent=11 // pred_region
          _
        $region44: #{nafblock_forward.3} parent=11 // pred_fallthru
          _
        // Predicated region
        $region45: #{nafblock_forward.3} parent=11 // pred_check
          %p390 = pneg %p302
        $region46: #{nafblock_forward.3} parent=11 // pred_check_branch
          %392 = sbr.rel (%p390) target = $region48
        $region47: #{nafblock_forward.3} parent=11 // pred_region
          _
        $region48: #{nafblock_forward.3} parent=11 // pred_fallthru
          _
        // Predicated region
        $region49: #{nafblock_forward.3} parent=11 // pred_check
          %p393 = pneg %p323
        $region50: #{nafblock_forward.3} parent=11 // pred_check_branch
          %395 = sbr.rel (%p393) target = $region52
        $region51: #{nafblock_forward.3} parent=11 // pred_region
          _
        $region52: #{nafblock_forward.3} parent=11 // pred_fallthru
          _
      $region12: #{nafblock_forward.3} parent=5 // pred_fallthru
        _
      %p396 = scmp.lt.s32.totalorder %s19, 4
      // Predicated region
      $region53: #{nafblock_forward.3} parent=5 // pred_check
        %p397 = pneg %p396
      $region54: #{nafblock_forward.3} parent=5 // pred_check_branch
        %399 = sbr.rel (%p397) target = $region56
      $region55: #{nafblock_forward.3} parent=5 // pred_region
        // Predicated region
        $region57: #{nafblock_forward.3} parent=55 // pred_check
          %p400 = pneg %p53
        $region58: #{nafblock_forward.3} parent=55 // pred_check_branch
          %402 = sbr.rel (%p400) target = $region60
        $region59: #{nafblock_forward.3} parent=55 // pred_region
          %s403 = sand.u32 %s43, 1
          %s404 = sand.u32 %s43, 1
          %s405 = smul.addr %s404, 16
          %s406 = scalar_lea.vmem [#allocation2], %s405
          %s407 = smul.addr %s26, 4
          %s408 = sadd.s32 %s27, %s407
          %s409 = smul.addr %s408, 8
          %s410 = scalar_lea.vmem %s0, %s409
          // Predicated region
          $region61: #{nafblock_forward.3} parent=59 // pred_check
            _
          $region62: #{nafblock_forward.3} parent=59 // pred_check_branch
            %412 = sbr.rel (0) target = $region64
          $region63: #{nafblock_forward.3} parent=59 // pred_region
            // Predicated region
            $region65: #{nafblock_forward.3} parent=63 // pred_check
              _
            $region66: #{nafblock_forward.3} parent=63 // pred_check_branch
              %414 = sbr.rel (0) target = $region68
            $region67: #{nafblock_forward.3} parent=63 // pred_region
              // Predicated region
              $region80: #{nafblock_forward.3} parent=67 // pred_check
                _
              $region81: #{nafblock_forward.3} parent=67 // pred_check_branch
                %432 = sbr.rel (0) target = $region83
              $region82: #{nafblock_forward.3} parent=67 // pred_region
                loop: start=0, step=1, limit=1
                $region84: #{nafblock_forward.3} parent=82 // loop_pre_header
                  _
                $region85: #{nafblock_forward.3} parent=82 // loop_header
                  %s434 = sphi 0, %s438
                  %p435 = scmp.ge.s32.totalorder %s434, 1
                  %s439 = sphi %s410, %s410
                  %s440 = sphi %s406, %s406
                $region86: #{nafblock_forward.3} parent=82 // loop_header_branch
                  %437 = sbr.rel (%p435) target = $region90
                $region87: #{nafblock_forward.3} parent=82 // loop_body
                  %v441 = vld [vmem:[%s439] sm:$0xff]
                  %442 = vst [vmem:[%s440] sm:$0xff] %v441
                  %v443 = vld [vmem:[%s439 + $0x10] sm:$0xff]
                  %444 = vst [vmem:[%s440 + $0x8] sm:$0xff] %v443
                $region88: #{nafblock_forward.3} parent=82 // loop_footer
                  %s438 = sadd.s32 1, %s434
                $region89: #{nafblock_forward.3} parent=82 // loop_footer_branch
                  %433 = sbr.rel target = $region85
                $region90: #{nafblock_forward.3} parent=82 // loop_exit
                  _
              $region83: #{nafblock_forward.3} parent=67 // pred_fallthru
                _
              // Predicated region
              $region91: #{nafblock_forward.3} parent=67 // pred_check
                _
              $region92: #{nafblock_forward.3} parent=67 // pred_check_branch
                %446 = sbr.rel target = $region94
              $region93: #{nafblock_forward.3} parent=67 // pred_region
                _
              $region94: #{nafblock_forward.3} parent=67 // pred_fallthru
                _
            $region68: #{nafblock_forward.3} parent=63 // pred_fallthru
              _
            // Predicated region
            $region69: #{nafblock_forward.3} parent=63 // pred_check
              _
            $region70: #{nafblock_forward.3} parent=63 // pred_check_branch
              %416 = sbr.rel target = $region72
            $region71: #{nafblock_forward.3} parent=63 // pred_region
              %s418 = ssub.s32 256, 1
              loop: start=0, step=1, limit=1
              $region73: #{nafblock_forward.3} parent=71 // loop_pre_header
                _
              $region74: #{nafblock_forward.3} parent=71 // loop_header
                %s420 = sphi 0, %s424
                %p421 = scmp.ge.s32.totalorder %s420, 1
                %s425 = sphi %s410, %s410
                %s426 = sphi %s406, %s406
              $region75: #{nafblock_forward.3} parent=71 // loop_header_branch
                %423 = sbr.rel (%p421) target = $region79
              $region76: #{nafblock_forward.3} parent=71 // loop_body
                %v427 = vld [vmem:[%s425] sm:%s418]
                %428 = vst [vmem:[%s426] sm:%s418] %v427
                %v429 = vld [vmem:[%s425 + $0x10] sm:%s418]
                %430 = vst [vmem:[%s426 + $0x8] sm:%s418] %v429
              $region77: #{nafblock_forward.3} parent=71 // loop_footer
                %s424 = sadd.s32 1, %s420
              $region78: #{nafblock_forward.3} parent=71 // loop_footer_branch
                %419 = sbr.rel target = $region74
              $region79: #{nafblock_forward.3} parent=71 // loop_exit
                _
            $region72: #{nafblock_forward.3} parent=63 // pred_fallthru
              _
          $region64: #{nafblock_forward.3} parent=59 // pred_fallthru
            _
          %447 = vnop
        $region60: #{nafblock_forward.3} parent=55 // pred_fallthru
          _
        // Predicated region
        $region95: #{nafblock_forward.3} parent=55 // pred_check
          %p448 = pneg %p81
        $region96: #{nafblock_forward.3} parent=55 // pred_check_branch
          %450 = sbr.rel (%p448) target = $region98
        $region97: #{nafblock_forward.3} parent=55 // pred_region
          %s451 = sand.u32 %s71, 1
          %s452 = sand.u32 %s71, 1
          %s453 = smul.addr %s452, 16
          %s454 = scalar_lea.vmem [#allocation3], %s453
          %s455 = smul.addr %s26, 4
          %s456 = sadd.s32 %s27, %s455
          %s457 = smul.addr %s456, 8
          %s458 = scalar_lea.vmem %s1, %s457
          // Predicated region
          $region99: #{nafblock_forward.3} parent=97 // pred_check
            _
          $region100: #{nafblock_forward.3} parent=97 // pred_check_branch
            %460 = sbr.rel (0) target = $region102
          $region101: #{nafblock_forward.3} parent=97 // pred_region
            // Predicated region
            $region103: #{nafblock_forward.3} parent=101 // pred_check
              _
            $region104: #{nafblock_forward.3} parent=101 // pred_check_branch
              %462 = sbr.rel (0) target = $region106
            $region105: #{nafblock_forward.3} parent=101 // pred_region
              // Predicated region
              $region118: #{nafblock_forward.3} parent=105 // pred_check
                _
              $region119: #{nafblock_forward.3} parent=105 // pred_check_branch
                %480 = sbr.rel (0) target = $region121
              $region120: #{nafblock_forward.3} parent=105 // pred_region
                loop: start=0, step=1, limit=1
                $region122: #{nafblock_forward.3} parent=120 // loop_pre_header
                  _
                $region123: #{nafblock_forward.3} parent=120 // loop_header
                  %s482 = sphi 0, %s486
                  %p483 = scmp.ge.s32.totalorder %s482, 1
                  %s487 = sphi %s458, %s458
                  %s488 = sphi %s454, %s454
                $region124: #{nafblock_forward.3} parent=120 // loop_header_branch
                  %485 = sbr.rel (%p483) target = $region128
                $region125: #{nafblock_forward.3} parent=120 // loop_body
                  %v489 = vld [vmem:[%s487] sm:$0xff]
                  %490 = vst [vmem:[%s488] sm:$0xff] %v489
                  %v491 = vld [vmem:[%s487 + $0x10] sm:$0xff]
                  %492 = vst [vmem:[%s488 + $0x8] sm:$0xff] %v491
                $region126: #{nafblock_forward.3} parent=120 // loop_footer
                  %s486 = sadd.s32 1, %s482
                $region127: #{nafblock_forward.3} parent=120 // loop_footer_branch
                  %481 = sbr.rel target = $region123
                $region128: #{nafblock_forward.3} parent=120 // loop_exit
                  _
              $region121: #{nafblock_forward.3} parent=105 // pred_fallthru
                _
              // Predicated region
              $region129: #{nafblock_forward.3} parent=105 // pred_check
                _
              $region130: #{nafblock_forward.3} parent=105 // pred_check_branch
                %494 = sbr.rel target = $region132
              $region131: #{nafblock_forward.3} parent=105 // pred_region
                _
              $region132: #{nafblock_forward.3} parent=105 // pred_fallthru
                _
            $region106: #{nafblock_forward.3} parent=101 // pred_fallthru
              _
            // Predicated region
            $region107: #{nafblock_forward.3} parent=101 // pred_check
              _
            $region108: #{nafblock_forward.3} parent=101 // pred_check_branch
              %464 = sbr.rel target = $region110
            $region109: #{nafblock_forward.3} parent=101 // pred_region
              %s466 = ssub.s32 256, 1
              loop: start=0, step=1, limit=1
              $region111: #{nafblock_forward.3} parent=109 // loop_pre_header
                _
              $region112: #{nafblock_forward.3} parent=109 // loop_header
                %s468 = sphi 0, %s472
                %p469 = scmp.ge.s32.totalorder %s468, 1
                %s473 = sphi %s458, %s458
                %s474 = sphi %s454, %s454
              $region113: #{nafblock_forward.3} parent=109 // loop_header_branch
                %471 = sbr.rel (%p469) target = $region117
              $region114: #{nafblock_forward.3} parent=109 // loop_body
                %v475 = vld [vmem:[%s473] sm:%s466]
                %476 = vst [vmem:[%s474] sm:%s466] %v475
                %v477 = vld [vmem:[%s473 + $0x10] sm:%s466]
                %478 = vst [vmem:[%s474 + $0x8] sm:%s466] %v477
              $region115: #{nafblock_forward.3} parent=109 // loop_footer
                %s472 = sadd.s32 1, %s468
              $region116: #{nafblock_forward.3} parent=109 // loop_footer_branch
                %467 = sbr.rel target = $region112
              $region117: #{nafblock_forward.3} parent=109 // loop_exit
                _
            $region110: #{nafblock_forward.3} parent=101 // pred_fallthru
              _
          $region102: #{nafblock_forward.3} parent=97 // pred_fallthru
            _
          %495 = vnop
        $region98: #{nafblock_forward.3} parent=55 // pred_fallthru
          _
        // Predicated region
        $region133: #{nafblock_forward.3} parent=55 // pred_check
          %p496 = pneg %p107
        $region134: #{nafblock_forward.3} parent=55 // pred_check_branch
          %498 = sbr.rel (%p496) target = $region136
        $region135: #{nafblock_forward.3} parent=55 // pred_region
          %p499 = scmp.lt.s32.totalorder %s26, 1
          %s500 = scalar_select %p499, %s26, 1
          %s501 = smul.addr %s500, 2
          %s502 = smul.addr %s501, 8
          %s503 = scalar_lea.vmem %s2, %s502
        $region136: #{nafblock_forward.3} parent=55 // pred_fallthru
          _
      $region56: #{nafblock_forward.3} parent=5 // pred_fallthru
        _
      %p504 = scmp.le.s32.totalorder 1, %s19
      %p505 = scmp.lt.s32.totalorder %s19, 5
      %p506 = pnand %p504, %p505
      %p507 = pneg %p506
      // Predicated region
      $region137: #{nafblock_forward.3} parent=5 // pred_check
        _
      $region138: #{nafblock_forward.3} parent=5 // pred_check_branch
        %509 = sbr.rel (%p506) target = $region140
      $region139: #{nafblock_forward.3} parent=5 // pred_region
        %s510 = ssub.s32 %s19, 1
        %s511 = sand.u32 %s46, 1
        %s512 = sand.u32 %s46, 1
        %s513 = smul.addr %s512, 16
        %s514 = scalar_lea.vmem [#allocation2], %s513
        // Predicated region
        $region141: #{nafblock_forward.3} parent=139 // pred_check
          %p515 = pneg %p59
        $region142: #{nafblock_forward.3} parent=139 // pred_check_branch
          %517 = sbr.rel (%p515) target = $region144
        $region143: #{nafblock_forward.3} parent=139 // pred_region
          _
        $region144: #{nafblock_forward.3} parent=139 // pred_fallthru
          _
        %s518 = sand.u32 %s74, 1
        %s519 = sand.u32 %s74, 1
        %s520 = smul.addr %s519, 16
        %s521 = scalar_lea.vmem [#allocation3], %s520
        // Predicated region
        $region145: #{nafblock_forward.3} parent=139 // pred_check
          %p522 = pneg %p87
        $region146: #{nafblock_forward.3} parent=139 // pred_check_branch
          %524 = sbr.rel (%p522) target = $region148
        $region147: #{nafblock_forward.3} parent=139 // pred_region
          _
        $region148: #{nafblock_forward.3} parent=139 // pred_fallthru
          _
        %s525 = sand.u32 %s46, 1
        %s526 = sand.u32 %s46, 1
        %s527 = smul.addr %s526, 16
        %s528 = scalar_lea.vmem [#allocation2], %s527
        %p529 = pneg %p59
        %p530 = pneg %p56
        %s531 = sand.u32 %s74, 1
        %s532 = sand.u32 %s74, 1
        %s533 = smul.addr %s532, 16
        %s534 = scalar_lea.vmem [#allocation3], %s533
        %p535 = pneg %p87
        %p536 = pneg %p84
        %p537 = scmp.lt.s32.totalorder %s28, 1
        %s538 = scalar_select %p537, %s28, 1
        %s539 = smul.addr %s538, 2
        %s540 = smul.addr %s539, 8
        %s541 = scalar_lea.vmem %s2, %s540
        %p542 = pneg %p113
        %p543 = pneg %p110
        %p544 = pneg %p134
        %p545 = pneg %p131
        %p546 = pneg %p155
        %p547 = pneg %p152
        %p548 = pneg %p176
        %p549 = pneg %p173
        %p550 = pneg %p197
        %p551 = pneg %p194
        %p552 = pneg %p218
        %p553 = pneg %p215
        %p554 = pneg %p239
        %p555 = pneg %p236
        %p556 = pneg %p260
        %p557 = pneg %p257
        %p558 = pneg %p281
        %p559 = pneg %p278
        %p560 = pneg %p302
        %p561 = pneg %p299
        %p562 = pneg %p323
        %p563 = pneg %p320
        %p564 = pneg %p351
        %p565 = pneg %p348
        %s566 = sand.u32 %s338, 1
        %s567 = sand.u32 %s338, 1
        %s568 = smul.addr %s567, 16
        %s569 = scalar_lea.vmem [#allocation4], %s568
        %p570 = scmp.lt.s32.totalorder %s28, 1
        %s571 = scalar_select %p570, %s28, 1
        %s572 = smul.addr %s571, 2
        %s573 = smul.addr %s572, 8
        %s574 = scalar_lea.vmem %s2, %s573
        %v575 = vld [vmem:[%s514] sm:$0xff]
        %v576 = vld [vmem:[%s514 + $0x8] sm:$0xff]
        %v577 = vld [vmem:[%s521] sm:$0xff]
        %v578 = vld [vmem:[%s521 + $0x8] sm:$0xff]
        %v579 = vld [vmem:[%s574] sm:$0xff]
        %v580 = vld [vmem:[%s574 + $0x8] sm:$0xff]
        %582 = vset.pattern.permute.xlu0 0
        %583 = vperm.xlu0 %582, %v579
        %v584 = vpop.permute.xlu0 %583
        %587 = vset.pattern.permute.xlu0 0
        %588 = vperm.xlu0 %587, %v580
        %v589 = vpop.permute.xlu0 %588
        %v591 = vmul.f32 %v575, %v584
        %v592 = vmul.f32 %v576, %v589
        %v593 = vld [vmem:[%s3] sm:$0xff]
        %v594 = vld [vmem:[%s3 + $0x8] sm:$0xff]
        %v595 = vld [vmem:[%s4] sm:$0xff]
        %v596 = vld [vmem:[%s4 + $0x8] sm:$0xff]
        %598 = vset.pattern.permute.xlu0 0
        %599 = vperm.xlu0 %598, %v595
        %v600 = vpop.permute.xlu0 %599
        %603 = vset.pattern.permute.xlu0 0
        %604 = vperm.xlu0 %603, %v596
        %v605 = vpop.permute.xlu0 %604
        %vm607 = vcmask 130048
        %v609 = vsel %vm607, %v593, 0
        %v612 = vsel %vm607, %v594, 0
        %614 = vmatpush.msra.mxu0 0.0
        %615 = vmatpush.msra.mxu0 0.0
        %616 = vmatpush.msra.mxu0 0.0
        %617 = vmatpush.msra.mxu0 0.0
        %618 = vmatpush.msra.mxu0 0.0
        %619 = vmatpush.msra.mxu0 0.0
        %620 = vmatpush.msra.mxu0 0.0
        %621 = vmatpush.msra.mxu0 0.0
        %622 = vmatpush.msra.mxu0 0.0
        %623 = vmatpush.msra.mxu0 0.0
        %624 = vmatpush.msra.mxu0 0.0
        %625 = vmatpush.msra.mxu0 0.0
        %626 = vmatpush.msra.mxu0 0.0
        %627 = vmatpush.msra.mxu0 0.0
        %628 = vmatpush.msra.mxu0 %v592
        %629 = vmatpush.msra.mxu0 %v591
        %630 = vmatmul.f32.gmra.mxu0 %v609
        %v631 = vpop.f32.mrf.mxu0
        %v632 = vadd.f32 %v600, %v631
        %633 = vmatmul.f32.gmra.mxu0 %v612
        %v634 = vpop.f32.mrf.mxu0
        %v635 = vadd.f32 %v605, %v634
        %636 = vdwg.mxu0
        %v637 = vld [vmem:[%s11] sm:$0xff]
        %v638 = vld [vmem:[%s11 + $0x8] sm:$0xff]
        %640 = vset.pattern.permute.xlu0 0
        %641 = vperm.xlu0 %640, %v637
        %v642 = vpop.permute.xlu0 %641
        %645 = vset.pattern.permute.xlu0 0
        %646 = vperm.xlu0 %645, %v638
        %v647 = vpop.permute.xlu0 %646
        %v649 = vmul.f32 %v632, %v642
        %v650 = vmul.f32 %v635, %v647
        %v651 = vadd.f32 %v577, %v649
        %v652 = vadd.f32 %v578, %v650
        %v653 = vadd.f32 %v651, %v652
        %v654 = vrot.slane %v653, 4
        %v655 = vadd.f32 %v653, %v654
        %v656 = vrot.slane %v655, 2
        %v657 = vadd.f32 %v655, %v656
        %v658 = vrot.slane %v657, 1
        %v659 = vadd.f32 %v657, %v658
        %v660 = vrcp.pop 16.0
        %v661 = vmul.f32 16.0, %v660
        %v662 = vsub.f32 1.0, %v661
        %v663 = vmul.f32 %v660, %v662
        %v664 = vadd.f32 %v660, %v663
        %vm665 = vweird.f32 %v660
        %v666 = vsel %vm665, %v660, %v664
        %v667 = vmul.f32 %v659, %v666
        %v668 = vmul.f32 %v651, %v651
        %v669 = vmul.f32 %v652, %v652
        %v670 = vadd.f32 %v668, %v669
        %v671 = vrot.slane %v670, 4
        %v672 = vadd.f32 %v670, %v671
        %v673 = vrot.slane %v672, 2
        %v674 = vadd.f32 %v672, %v673
        %v675 = vrot.slane %v674, 1
        %v676 = vadd.f32 %v674, %v675
        %v677 = vmul.f32 %v676, %v666
        %v678 = vmul.f32 %v667, %v667
        %v679 = vsub.f32 %v677, %v678
        %v680 = vmax.f32 %v679, 0.0
        %v681 = vsub.f32 %v651, %v667
        %v682 = vsub.f32 %v652, %v667
        %v683 = vadd.f32 %v680, 1e-06
        %v684 = vrsqrt.pop %v683
        %v685 = vmul.f32 %v684, %v683
        %v686 = vmul.f32 %v685, %v684
        %v687 = vmul.f32 0.5, %v686
        %v688 = vsub.f32 1.5, %v687
        %v689 = vmul.f32 %v684, %v688
        %vm690 = vweird.f32 %v683
        %vm691 = vweird.f32 %v684
        %vm692 = vmor %vm690, %vm691
        %v693 = vsel %vm692, %v684, %v689
        %v694 = vmul.f32 %v681, %v693
        %v695 = vmul.f32 %v682, %v693
        %v696 = vld [vmem:[%s5] sm:$0xff]
        %v697 = vld [vmem:[%s5 + $0x8] sm:$0xff]
        %699 = vset.pattern.permute.xlu0 0
        %700 = vperm.xlu0 %699, %v696
        %v701 = vpop.permute.xlu0 %700
        %704 = vset.pattern.permute.xlu0 0
        %705 = vperm.xlu0 %704, %v697
        %v706 = vpop.permute.xlu0 %705
        %v708 = vmul.f32 %v694, %v701
        %v709 = vmul.f32 %v695, %v706
        %v710 = vld [vmem:[%s6] sm:$0xff]
        %v711 = vld [vmem:[%s6 + $0x8] sm:$0xff]
        %713 = vset.pattern.permute.xlu0 0
        %714 = vperm.xlu0 %713, %v710
        %v715 = vpop.permute.xlu0 %714
        %718 = vset.pattern.permute.xlu0 0
        %719 = vperm.xlu0 %718, %v711
        %v720 = vpop.permute.xlu0 %719
        %v722 = vadd.f32 %v708, %v715
        %v723 = vadd.f32 %v709, %v720
        %v724 = vld [vmem:[%s7] sm:$0xff]
        %v725 = vld [vmem:[%s7 + $0x8] sm:$0xff]
        %v726 = vld [vmem:[%s7 + $0x10] sm:$0xff]
        %v727 = vld [vmem:[%s7 + $0x18] sm:$0xff]
        %v728 = vld [vmem:[%s8] sm:$0xff]
        %v729 = vld [vmem:[%s8 + $0x8] sm:$0xff]
        %v730 = vld [vmem:[%s8 + $0x10] sm:$0xff]
        %v731 = vld [vmem:[%s8 + $0x18] sm:$0xff]
        %733 = vset.pattern.permute.xlu0 0
        %734 = vperm.xlu0 %733, %v728
        %v735 = vpop.permute.xlu0 %734
        %738 = vset.pattern.permute.xlu0 0
        %739 = vperm.xlu0 %738, %v729
        %v740 = vpop.permute.xlu0 %739
        %743 = vset.pattern.permute.xlu0 0
        %744 = vperm.xlu0 %743, %v730
        %v745 = vpop.permute.xlu0 %744
        %748 = vset.pattern.permute.xlu0 0
        %749 = vperm.xlu0 %748, %v731
        %v750 = vpop.permute.xlu0 %749
        %v753 = vsel %vm607, %v724, 0
        %v756 = vsel %vm607, %v725, 0
        %v759 = vsel %vm607, %v726, 0
        %v762 = vsel %vm607, %v727, 0
        %764 = vmatpush.msra.mxu0 0.0
        %765 = vmatpush.msra.mxu0 0.0
        %766 = vmatpush.msra.mxu0 0.0
        %767 = vmatpush.msra.mxu0 0.0
        %768 = vmatpush.msra.mxu0 0.0
        %769 = vmatpush.msra.mxu0 0.0
        %770 = vmatpush.msra.mxu0 0.0
        %771 = vmatpush.msra.mxu0 0.0
        %772 = vmatpush.msra.mxu0 0.0
        %773 = vmatpush.msra.mxu0 0.0
        %774 = vmatpush.msra.mxu0 0.0
        %775 = vmatpush.msra.mxu0 0.0
        %776 = vmatpush.msra.mxu0 0.0
        %777 = vmatpush.msra.mxu0 0.0
        %778 = vmatpush.msra.mxu0 %v723
        %779 = vmatpush.msra.mxu0 %v722
        %780 = vmatmul.f32.gmra.mxu0 %v753
        %v781 = vpop.f32.mrf.mxu0
        %v782 = vadd.f32 %v735, %v781
        %783 = vmatmul.f32.gmra.mxu0 %v756
        %v784 = vpop.f32.mrf.mxu0
        %v785 = vadd.f32 %v740, %v784
        %786 = vmatmul.f32.gmra.mxu0 %v759
        %v787 = vpop.f32.mrf.mxu0
        %v788 = vadd.f32 %v745, %v787
        %789 = vmatmul.f32.gmra.mxu0 %v762
        %v790 = vpop.f32.mrf.mxu0
        %v791 = vadd.f32 %v750, %v790
        %792 = vdwg.mxu0
        %v793 = vmul.f32 %v782, %v788
        %v794 = vmul.f32 %v785, %v791
        %v795 = vld [vmem:[%s9] sm:$0xff]
        %v796 = vld [vmem:[%s9 + $0x8] sm:$0xff]
        %v797 = vld [vmem:[%s10] sm:$0xff]
        %v798 = vld [vmem:[%s10 + $0x8] sm:$0xff]
        %800 = vset.pattern.permute.xlu0 0
        %801 = vperm.xlu0 %800, %v797
        %v802 = vpop.permute.xlu0 %801
        %805 = vset.pattern.permute.xlu0 0
        %806 = vperm.xlu0 %805, %v798
        %v807 = vpop.permute.xlu0 %806
        %v810 = vsel %vm607, %v795, 0
        %v813 = vsel %vm607, %v796, 0
        %815 = vmatpush.msra.mxu0 0.0
        %816 = vmatpush.msra.mxu0 0.0
        %817 = vmatpush.msra.mxu0 0.0
        %818 = vmatpush.msra.mxu0 0.0
        %819 = vmatpush.msra.mxu0 0.0
        %820 = vmatpush.msra.mxu0 0.0
        %821 = vmatpush.msra.mxu0 0.0
        %822 = vmatpush.msra.mxu0 0.0
        %823 = vmatpush.msra.mxu0 0.0
        %824 = vmatpush.msra.mxu0 0.0
        %825 = vmatpush.msra.mxu0 0.0
        %826 = vmatpush.msra.mxu0 0.0
        %827 = vmatpush.msra.mxu0 0.0
        %828 = vmatpush.msra.mxu0 0.0
        %829 = vmatpush.msra.mxu0 %v794
        %830 = vmatpush.msra.mxu0 %v793
        %831 = vmatmul.f32.gmra.mxu0 %v810
        %v832 = vpop.f32.mrf.mxu0
        %v833 = vadd.f32 %v802, %v832
        %834 = vmatmul.f32.gmra.mxu0 %v813
        %v835 = vpop.f32.mrf.mxu0
        %v836 = vadd.f32 %v807, %v835
        %837 = vdwg.mxu0
        %v838 = vld [vmem:[%s12] sm:$0xff]
        %v839 = vld [vmem:[%s12 + $0x8] sm:$0xff]
        %841 = vset.pattern.permute.xlu0 0
        %842 = vperm.xlu0 %841, %v838
        %v843 = vpop.permute.xlu0 %842
        %846 = vset.pattern.permute.xlu0 0
        %847 = vperm.xlu0 %846, %v839
        %v848 = vpop.permute.xlu0 %847
        %v850 = vmul.f32 %v833, %v843
        %v851 = vmul.f32 %v836, %v848
        %v852 = vadd.f32 %v651, %v850
        %v853 = vadd.f32 %v652, %v851
        %854 = vst [vmem:[%s569] sm:$0xff] %v852
        %855 = vst [vmem:[%s569 + $0x8] sm:$0xff] %v853
        %s856 = sand.u32 %s338, 1
        %s857 = sand.u32 %s338, 1
        %s858 = smul.addr %s857, 16
        %s859 = scalar_lea.vmem [#allocation4], %s858
        // Predicated region
        $region149: #{nafblock_forward.3} parent=139 // pred_check
          %p860 = pneg %p348
        $region150: #{nafblock_forward.3} parent=139 // pred_check_branch
          %862 = sbr.rel (%p860) target = $region152
        $region151: #{nafblock_forward.3} parent=139 // pred_region
          %s863 = smul.addr %s28, 4
          %s864 = sadd.s32 %s29, %s863
          %s865 = smul.addr %s864, 8
          %s866 = scalar_lea.vmem %s13, %s865
          // Predicated region
          $region153: #{nafblock_forward.3} parent=151 // pred_check
            _
          $region154: #{nafblock_forward.3} parent=151 // pred_check_branch
            %868 = sbr.rel (0) target = $region156
          $region155: #{nafblock_forward.3} parent=151 // pred_region
            // Predicated region
            $region157: #{nafblock_forward.3} parent=155 // pred_check
              _
            $region158: #{nafblock_forward.3} parent=155 // pred_check_branch
              %870 = sbr.rel (0) target = $region160
            $region159: #{nafblock_forward.3} parent=155 // pred_region
              // Predicated region
              $region172: #{nafblock_forward.3} parent=159 // pred_check
                _
              $region173: #{nafblock_forward.3} parent=159 // pred_check_branch
                %888 = sbr.rel (0) target = $region175
              $region174: #{nafblock_forward.3} parent=159 // pred_region
                loop: start=0, step=1, limit=1
                $region176: #{nafblock_forward.3} parent=174 // loop_pre_header
                  _
                $region177: #{nafblock_forward.3} parent=174 // loop_header
                  %s890 = sphi 0, %s894
                  %p891 = scmp.ge.s32.totalorder %s890, 1
                  %s895 = sphi %s859, %s859
                  %s896 = sphi %s866, %s866
                $region178: #{nafblock_forward.3} parent=174 // loop_header_branch
                  %893 = sbr.rel (%p891) target = $region182
                $region179: #{nafblock_forward.3} parent=174 // loop_body
                  %v897 = vld [vmem:[%s895] sm:$0xff]
                  %898 = vst [vmem:[%s896] sm:$0xff] %v897
                  %v899 = vld [vmem:[%s895 + $0x8] sm:$0xff]
                  %900 = vst [vmem:[%s896 + $0x10] sm:$0xff] %v899
                $region180: #{nafblock_forward.3} parent=174 // loop_footer
                  %s894 = sadd.s32 1, %s890
                $region181: #{nafblock_forward.3} parent=174 // loop_footer_branch
                  %889 = sbr.rel target = $region177
                $region182: #{nafblock_forward.3} parent=174 // loop_exit
                  _
              $region175: #{nafblock_forward.3} parent=159 // pred_fallthru
                _
              // Predicated region
              $region183: #{nafblock_forward.3} parent=159 // pred_check
                _
              $region184: #{nafblock_forward.3} parent=159 // pred_check_branch
                %902 = sbr.rel target = $region186
              $region185: #{nafblock_forward.3} parent=159 // pred_region
                _
              $region186: #{nafblock_forward.3} parent=159 // pred_fallthru
                _
            $region160: #{nafblock_forward.3} parent=155 // pred_fallthru
              _
            // Predicated region
            $region161: #{nafblock_forward.3} parent=155 // pred_check
              _
            $region162: #{nafblock_forward.3} parent=155 // pred_check_branch
              %872 = sbr.rel target = $region164
            $region163: #{nafblock_forward.3} parent=155 // pred_region
              %s874 = ssub.s32 256, 1
              loop: start=0, step=1, limit=1
              $region165: #{nafblock_forward.3} parent=163 // loop_pre_header
                _
              $region166: #{nafblock_forward.3} parent=163 // loop_header
                %s876 = sphi 0, %s880
                %p877 = scmp.ge.s32.totalorder %s876, 1
                %s881 = sphi %s859, %s859
                %s882 = sphi %s866, %s866
              $region167: #{nafblock_forward.3} parent=163 // loop_header_branch
                %879 = sbr.rel (%p877) target = $region171
              $region168: #{nafblock_forward.3} parent=163 // loop_body
                %v883 = vld [vmem:[%s881] sm:%s874]
                %884 = vst [vmem:[%s882] sm:%s874] %v883
                %v885 = vld [vmem:[%s881 + $0x8] sm:%s874]
                %886 = vst [vmem:[%s882 + $0x10] sm:%s874] %v885
              $region169: #{nafblock_forward.3} parent=163 // loop_footer
                %s880 = sadd.s32 1, %s876
              $region170: #{nafblock_forward.3} parent=163 // loop_footer_branch
                %875 = sbr.rel target = $region166
              $region171: #{nafblock_forward.3} parent=163 // loop_exit
                _
            $region164: #{nafblock_forward.3} parent=155 // pred_fallthru
              _
          $region156: #{nafblock_forward.3} parent=151 // pred_fallthru
            _
          %903 = vnop
        $region152: #{nafblock_forward.3} parent=139 // pred_fallthru
          _
      $region140: #{nafblock_forward.3} parent=5 // pred_fallthru
        _
      %p904 = scmp.le.s32.totalorder 2, %s19
      // Predicated region
      $region187: #{nafblock_forward.3} parent=5 // pred_check
        %p905 = pneg %p904
      $region188: #{nafblock_forward.3} parent=5 // pred_check_branch
        %907 = sbr.rel (%p905) target = $region190
      $region189: #{nafblock_forward.3} parent=5 // pred_region
        %s908 = ssub.s32 %s19, 2
        // Predicated region
        $region191: #{nafblock_forward.3} parent=189 // pred_check
          %p909 = pneg %p354
        $region192: #{nafblock_forward.3} parent=189 // pred_check_branch
          %911 = sbr.rel (%p909) target = $region194
        $region193: #{nafblock_forward.3} parent=189 // pred_region
          %s912 = sand.u32 %s339, 1
          %s913 = sand.u32 %s339, 1
          %s914 = smul.addr %s913, 16
          %s915 = scalar_lea.vmem [#allocation4], %s914
        $region194: #{nafblock_forward.3} parent=189 // pred_fallthru
          _
      $region190: #{nafblock_forward.3} parent=5 // pred_fallthru
        _
    $region6: #{nafblock_forward.3} parent=1 // loop_footer
      %s23 = sadd.s32 1, %s19
    $region7: #{nafblock_forward.3} parent=1 // loop_footer_branch
      %18 = sbr.rel target = $region3
    $region8: #{nafblock_forward.3} parent=1 // loop_exit
      _

// kernel: nafblock_forward.2
$region0: #{nafblock_forward.2}
  #allocation0 [shape = 'u32[]', space=smem, size = 0x4, offset = 0x4, fixed_abs, tag = 'smem constant byte address 0x4 - core index']
  #allocation1 [shape = 'u32[72,128]{1,0:T(1,128)}', space=vmem, size = 0x9000, scoped, tag = 'internal scratch']
  %s0 = inlined_call_operand.vmem [shape: f32[2,16,256], index: 0, kind: input, shape index: {}]
  %s1 = inlined_call_operand.vmem [shape: f32[2,2,16,16], index: 1, kind: input, shape index: {}]
  %s2 = inlined_call_operand.vmem [shape: f32[2,2,16,16], index: 2, kind: input, shape index: {}]
  %s3 = inlined_call_operand.vmem [shape: f32[16,1], index: 3, kind: input, shape index: {}]
  %s4 = inlined_call_operand.vmem [shape: f32[16,1], index: 4, kind: input, shape index: {}]
  %s5 = inlined_call_operand.vmem [shape: f32[32,16], index: 5, kind: input, shape index: {}]
  %s6 = inlined_call_operand.vmem [shape: f32[32,1], index: 6, kind: input, shape index: {}]
  %s7 = inlined_call_operand.vmem [shape: f32[32,9], index: 7, kind: input, shape index: {}]
  %s8 = inlined_call_operand.vmem [shape: f32[32,1], index: 8, kind: input, shape index: {}]
  %s9 = inlined_call_operand.vmem [shape: f32[2,16,256], index: 9, kind: output, shape index: {0}]
  %s10 = inlined_call_operand.vmem [shape: f32[2,2,16,1], index: 10, kind: output, shape index: {1}]
  %11 = xla_tuple %s9, %s10
  %s12 = sld [smem:[#allocation0]]
  $region149: #{nafblock_forward.2} parent=0
    _
  %s14 = ssub.s32 1, %s12
  %s15 = scalar_select 0, %s14, %s12
  $region1: #{nafblock_forward.2} parent=0
    #allocation2 [shape = 'u8[16384]{0}', space=vmem, size = 0x4000, scoped, tag = 'input window, operand 0']
    #allocation3 [shape = 'u8[16384]{0}', space=vmem, size = 0x4000, scoped, tag = 'output window, operand 0']
    loop: start=0, step=1, limit=6
    $region2: #{nafblock_forward.2} parent=1 // loop_pre_header
      _
    $region3: #{nafblock_forward.2} parent=1 // loop_header
      %s17 = sphi 0, %s21
      %p18 = scmp.ge.s32.totalorder %s17, 6
      %s24 = sphi 0, %s36
      %s25 = sphi 0, %s32
      %s26 = sphi 0, %s24
      %s27 = sphi 0, %s25
      %s28 = sphi 0, %s26
      %s29 = sphi 0, %s27
      %s41 = sphi 0, %s43
      %s44 = sphi 0, %s41
      %s45 = sphi 0, %s44
      %s61 = sphi 0, %s45
      %s69 = sphi 0, %s71
      %s72 = sphi 0, %s69
      %s73 = sphi 0, %s72
      %s89 = sphi 0, %s73
      %s97 = sphi 0, %s99
      %s100 = sphi 0, %s97
      %s101 = sphi 0, %s100
      %s117 = sphi 0, %s101
      %s121 = sphi 0, %s121
      %s123 = sphi 0, %s121
      %s124 = sphi 0, %s123
      %s138 = sphi 0, %s124
      %s142 = sphi 0, %s142
      %s144 = sphi 0, %s142
      %s145 = sphi 0, %s144
      %s159 = sphi 0, %s145
      %s163 = sphi 0, %s163
      %s165 = sphi 0, %s163
      %s166 = sphi 0, %s165
      %s180 = sphi 0, %s166
      %s184 = sphi 0, %s184
      %s186 = sphi 0, %s184
      %s187 = sphi 0, %s186
      %s201 = sphi 0, %s187
      %s205 = sphi 0, %s205
      %s207 = sphi 0, %s205
      %s208 = sphi 0, %s207
      %s222 = sphi 0, %s208
      %s226 = sphi 0, %s226
      %s228 = sphi 0, %s226
      %s229 = sphi 0, %s228
      %s243 = sphi 0, %s229
      %s251 = sphi 0, %s253
      %s254 = sphi 0, %s251
      %s255 = sphi 0, %s254
      %s271 = sphi 0, %s255
      %s279 = sphi 0, %s281
      %s282 = sphi 0, %s279
      %s283 = sphi 0, %s282
      %s299 = sphi 0, %s283
    $region4: #{nafblock_forward.2} parent=1 // loop_header_branch
      %20 = sbr.rel (%p18) target = $region8
    $region5: #{nafblock_forward.2} parent=1 // loop_body
      %s22 = ssub.s32 %s17, 1
      %s23 = ssub.s32 %s17, 2
      %s30 = sadd.s32 1, %s25
      %p31 = scmp.ge.s32.totalorder %s30, 2
      %s32 = scalar_select %p31, 0, %s30
      %s33 = sadd.s32 1, %s24
      %s34 = scalar_select %p31, %s33, %s24
      %p35 = scmp.ge.s32.totalorder %s34, 2
      %s36 = scalar_select %p35, 0, %s34
      %s37 = ssub.s32 %s24, %s36
      %s38 = ssub.s32 %s25, %s32
      %s39 = sor.u32 %s37, %s38
      %p40 = scmp.eq.s32.totalorder %s39, 0
      %s42 = sadd.s32 %s41, 1
      %s43 = scalar_select %p40, %s41, %s42
      %p46 = pneg %p40
      %p47 = scmp.eq.s32.totalorder %s17, 3
      %p48 = por %p46, %p47
      %p49 = scmp.ne.s32.totalorder %s41, %s44
      %p50 = scmp.eq.s32.totalorder %s17, 0
      %p51 = por %p49, %p50
      %p52 = scmp.ne.s32.totalorder %s41, %s44
      %p53 = scmp.eq.s32.totalorder %s22, 3
      %p54 = por %p52, %p53
      %p55 = scmp.ne.s32.totalorder %s44, %s45
      %p56 = scmp.eq.s32.totalorder %s22, 0
      %p57 = por %p55, %p56
      %p58 = scmp.ne.s32.totalorder %s44, %s45
      %p59 = scmp.eq.s32.totalorder %s23, 3
      %p60 = por %p58, %p59
      %p62 = scmp.ne.s32.totalorder %s45, %s61
      %p63 = scmp.eq.s32.totalorder %s23, 0
      %p64 = por %p62, %p63
      %s65 = ssub.s32 %s24, %s36
      %s66 = ssub.s32 %s25, %s32
      %s67 = sor.u32 %s65, %s66
      %p68 = scmp.eq.s32.totalorder %s67, 0
      %s70 = sadd.s32 %s69, 1
      %s71 = scalar_select %p68, %s69, %s70
      %p74 = pneg %p68
      %p75 = scmp.eq.s32.totalorder %s17, 3
      %p76 = por %p74, %p75
      %p77 = scmp.ne.s32.totalorder %s69, %s72
      %p78 = scmp.eq.s32.totalorder %s17, 0
      %p79 = por %p77, %p78
      %p80 = scmp.ne.s32.totalorder %s69, %s72
      %p81 = scmp.eq.s32.totalorder %s22, 3
      %p82 = por %p80, %p81
      %p83 = scmp.ne.s32.totalorder %s72, %s73
      %p84 = scmp.eq.s32.totalorder %s22, 0
      %p85 = por %p83, %p84
      %p86 = scmp.ne.s32.totalorder %s72, %s73
      %p87 = scmp.eq.s32.totalorder %s23, 3
      %p88 = por %p86, %p87
      %p90 = scmp.ne.s32.totalorder %s73, %s89
      %p91 = scmp.eq.s32.totalorder %s23, 0
      %p92 = por %p90, %p91
      %s93 = ssub.s32 %s24, %s36
      %s94 = ssub.s32 %s25, %s32
      %s95 = sor.u32 %s93, %s94
      %p96 = scmp.eq.s32.totalorder %s95, 0
      %s98 = sadd.s32 %s97, 1
      %s99 = scalar_select %p96, %s97, %s98
      %p102 = pneg %p96
      %p103 = scmp.eq.s32.totalorder %s17, 3
      %p104 = por %p102, %p103
      %p105 = scmp.ne.s32.totalorder %s97, %s100
      %p106 = scmp.eq.s32.totalorder %s17, 0
      %p107 = por %p105, %p106
      %p108 = scmp.ne.s32.totalorder %s97, %s100
      %p109 = scmp.eq.s32.totalorder %s22, 3
      %p110 = por %p108, %p109
      %p111 = scmp.ne.s32.totalorder %s100, %s101
      %p112 = scmp.eq.s32.totalorder %s22, 0
      %p113 = por %p111, %p112
      %p114 = scmp.ne.s32.totalorder %s100, %s101
      %p115 = scmp.eq.s32.totalorder %s23, 3
      %p116 = por %p114, %p115
      %p118 = scmp.ne.s32.totalorder %s101, %s117
      %p119 = scmp.eq.s32.totalorder %s23, 0
      %p120 = por %p118, %p119
      %s122 = sadd.s32 %s121, 1
      %p125 = scmp.eq.s32.totalorder %s17, 3
      %p126 = scmp.ne.s32.totalorder %s121, %s123
      %p127 = scmp.eq.s32.totalorder %s17, 0
      %p128 = por %p126, %p127
      %p129 = scmp.ne.s32.totalorder %s121, %s123
      %p130 = scmp.eq.s32.totalorder %s22, 3
      %p131 = por %p129, %p130
      %p132 = scmp.ne.s32.totalorder %s123, %s124
      %p133 = scmp.eq.s32.totalorder %s22, 0
      %p134 = por %p132, %p133
      %p135 = scmp.ne.s32.totalorder %s123, %s124
      %p136 = scmp.eq.s32.totalorder %s23, 3
      %p137 = por %p135, %p136
      %p139 = scmp.ne.s32.totalorder %s124, %s138
      %p140 = scmp.eq.s32.totalorder %s23, 0
      %p141 = por %p139, %p140
      %s143 = sadd.s32 %s142, 1
      %p146 = scmp.eq.s32.totalorder %s17, 3
      %p147 = scmp.ne.s32.totalorder %s142, %s144
      %p148 = scmp.eq.s32.totalorder %s17, 0
      %p149 = por %p147, %p148
      %p150 = scmp.ne.s32.totalorder %s142, %s144
      %p151 = scmp.eq.s32.totalorder %s22, 3
      %p152 = por %p150, %p151
      %p153 = scmp.ne.s32.totalorder %s144, %s145
      %p154 = scmp.eq.s32.totalorder %s22, 0
      %p155 = por %p153, %p154
      %p156 = scmp.ne.s32.totalorder %s144, %s145
      %p157 = scmp.eq.s32.totalorder %s23, 3
      %p158 = por %p156, %p157
      %p160 = scmp.ne.s32.totalorder %s145, %s159
      %p161 = scmp.eq.s32.totalorder %s23, 0
      %p162 = por %p160, %p161
      %s164 = sadd.s32 %s163, 1
      %p167 = scmp.eq.s32.totalorder %s17, 3
      %p168 = scmp.ne.s32.totalorder %s163, %s165
      %p169 = scmp.eq.s32.totalorder %s17, 0
      %p170 = por %p168, %p169
      %p171 = scmp.ne.s32.totalorder %s163, %s165
      %p172 = scmp.eq.s32.totalorder %s22, 3
      %p173 = por %p171, %p172
      %p174 = scmp.ne.s32.totalorder %s165, %s166
      %p175 = scmp.eq.s32.totalorder %s22, 0
      %p176 = por %p174, %p175
      %p177 = scmp.ne.s32.totalorder %s165, %s166
      %p178 = scmp.eq.s32.totalorder %s23, 3
      %p179 = por %p177, %p178
      %p181 = scmp.ne.s32.totalorder %s166, %s180
      %p182 = scmp.eq.s32.totalorder %s23, 0
      %p183 = por %p181, %p182
      %s185 = sadd.s32 %s184, 1
      %p188 = scmp.eq.s32.totalorder %s17, 3
      %p189 = scmp.ne.s32.totalorder %s184, %s186
      %p190 = scmp.eq.s32.totalorder %s17, 0
      %p191 = por %p189, %p190
      %p192 = scmp.ne.s32.totalorder %s184, %s186
      %p193 = scmp.eq.s32.totalorder %s22, 3
      %p194 = por %p192, %p193
      %p195 = scmp.ne.s32.totalorder %s186, %s187
      %p196 = scmp.eq.s32.totalorder %s22, 0
      %p197 = por %p195, %p196
      %p198 = scmp.ne.s32.totalorder %s186, %s187
      %p199 = scmp.eq.s32.totalorder %s23, 3
      %p200 = por %p198, %p199
      %p202 = scmp.ne.s32.totalorder %s187, %s201
      %p203 = scmp.eq.s32.totalorder %s23, 0
      %p204 = por %p202, %p203
      %s206 = sadd.s32 %s205, 1
      %p209 = scmp.eq.s32.totalorder %s17, 3
      %p210 = scmp.ne.s32.totalorder %s205, %s207
      %p211 = scmp.eq.s32.totalorder %s17, 0
      %p212 = por %p210, %p211
      %p213 = scmp.ne.s32.totalorder %s205, %s207
      %p214 = scmp.eq.s32.totalorder %s22, 3
      %p215 = por %p213, %p214
      %p216 = scmp.ne.s32.totalorder %s207, %s208
      %p217 = scmp.eq.s32.totalorder %s22, 0
      %p218 = por %p216, %p217
      %p219 = scmp.ne.s32.totalorder %s207, %s208
      %p220 = scmp.eq.s32.totalorder %s23, 3
      %p221 = por %p219, %p220
      %p223 = scmp.ne.s32.totalorder %s208, %s222
      %p224 = scmp.eq.s32.totalorder %s23, 0
      %p225 = por %p223, %p224
      %s227 = sadd.s32 %s226, 1
      %p230 = scmp.eq.s32.totalorder %s17, 3
      %p231 = scmp.ne.s32.totalorder %s226, %s228
      %p232 = scmp.eq.s32.totalorder %s17, 0
      %p233 = por %p231, %p232
      %p234 = scmp.ne.s32.totalorder %s226, %s228
      %p235 = scmp.eq.s32.totalorder %s22, 3
      %p236 = por %p234, %p235
      %p237 = scmp.ne.s32.totalorder %s228, %s229
      %p238 = scmp.eq.s32.totalorder %s22, 0
      %p239 = por %p237, %p238
      %p240 = scmp.ne.s32.totalorder %s228, %s229
      %p241 = scmp.eq.s32.totalorder %s23, 3
      %p242 = por %p240, %p241
      %p244 = scmp.ne.s32.totalorder %s229, %s243
      %p245 = scmp.eq.s32.totalorder %s23, 0
      %p246 = por %p244, %p245
      %s247 = ssub.s32 %s24, %s36
      %s248 = ssub.s32 %s25, %s32
      %s249 = sor.u32 %s247, %s248
      %p250 = scmp.eq.s32.totalorder %s249, 0
      %s252 = sadd.s32 %s251, 1
      %s253 = scalar_select %p250, %s251, %s252
      %p256 = pneg %p250
      %p257 = scmp.eq.s32.totalorder %s17, 3
      %p258 = por %p256, %p257
      %p259 = scmp.ne.s32.totalorder %s251, %s254
      %p260 = scmp.eq.s32.totalorder %s17, 0
      %p261 = por %p259, %p260
      %p262 = scmp.ne.s32.totalorder %s251, %s254
      %p263 = scmp.eq.s32.totalorder %s22, 3
      %p264 = por %p262, %p263
      %p265 = scmp.ne.s32.totalorder %s254, %s255
      %p266 = scmp.eq.s32.totalorder %s22, 0
      %p267 = por %p265, %p266
      %p268 = scmp.ne.s32.totalorder %s254, %s255
      %p269 = scmp.eq.s32.totalorder %s23, 3
      %p270 = por %p268, %p269
      %p272 = scmp.ne.s32.totalorder %s255, %s271
      %p273 = scmp.eq.s32.totalorder %s23, 0
      %p274 = por %p272, %p273
      %s275 = ssub.s32 %s24, %s36
      %s276 = ssub.s32 %s25, %s32
      %s277 = sor.u32 %s275, %s276
      %p278 = scmp.eq.s32.totalorder %s277, 0
      %s280 = sadd.s32 %s279, 1
      %s281 = scalar_select %p278, %s279, %s280
      %p284 = pneg %p278
      %p285 = scmp.eq.s32.totalorder %s17, 3
      %p286 = por %p284, %p285
      %p287 = scmp.ne.s32.totalorder %s279, %s282
      %p288 = scmp.eq.s32.totalorder %s17, 0
      %p289 = por %p287, %p288
      %p290 = scmp.ne.s32.totalorder %s279, %s282
      %p291 = scmp.eq.s32.totalorder %s22, 3
      %p292 = por %p290, %p291
      %p293 = scmp.ne.s32.totalorder %s282, %s283
      %p294 = scmp.eq.s32.totalorder %s22, 0
      %p295 = por %p293, %p294
      %p296 = scmp.ne.s32.totalorder %s282, %s283
      %p297 = scmp.eq.s32.totalorder %s23, 3
      %p298 = por %p296, %p297
      %p300 = scmp.ne.s32.totalorder %s283, %s299
      %p301 = scmp.eq.s32.totalorder %s23, 0
      %p302 = por %p300, %p301
      %p303 = scmp.le.s32.totalorder 1, %s17
      %p304 = scmp.lt.s32.totalorder %s17, 5
      %p305 = pnand %p303, %p304
      %p306 = pneg %p305
      // Predicated region
      $region9: #{nafblock_forward.2} parent=5 // pred_check
        _
      $region10: #{nafblock_forward.2} parent=5 // pred_check_branch
        %308 = sbr.rel (%p305) target = $region12
      $region11: #{nafblock_forward.2} parent=5 // pred_region
        %s309 = ssub.s32 %s17, 1
        // Predicated region
        $region13: #{nafblock_forward.2} parent=11 // pred_check
          %p310 = pneg %p134
        $region14: #{nafblock_forward.2} parent=11 // pred_check_branch
          %312 = sbr.rel (%p310) target = $region16
        $region15: #{nafblock_forward.2} parent=11 // pred_region
          _
        $region16: #{nafblock_forward.2} parent=11 // pred_fallthru
          _
        // Predicated region
        $region17: #{nafblock_forward.2} parent=11 // pred_check
          %p313 = pneg %p155
        $region18: #{nafblock_forward.2} parent=11 // pred_check_branch
          %315 = sbr.rel (%p313) target = $region20
        $region19: #{nafblock_forward.2} parent=11 // pred_region
          _
        $region20: #{nafblock_forward.2} parent=11 // pred_fallthru
          _
        // Predicated region
        $region21: #{nafblock_forward.2} parent=11 // pred_check
          %p316 = pneg %p176
        $region22: #{nafblock_forward.2} parent=11 // pred_check_branch
          %318 = sbr.rel (%p316) target = $region24
        $region23: #{nafblock_forward.2} parent=11 // pred_region
          _
        $region24: #{nafblock_forward.2} parent=11 // pred_fallthru
          _
        // Predicated region
        $region25: #{nafblock_forward.2} parent=11 // pred_check
          %p319 = pneg %p197
        $region26: #{nafblock_forward.2} parent=11 // pred_check_branch
          %321 = sbr.rel (%p319) target = $region28
        $region27: #{nafblock_forward.2} parent=11 // pred_region
          _
        $region28: #{nafblock_forward.2} parent=11 // pred_fallthru
          _
        // Predicated region
        $region29: #{nafblock_forward.2} parent=11 // pred_check
          %p322 = pneg %p218
        $region30: #{nafblock_forward.2} parent=11 // pred_check_branch
          %324 = sbr.rel (%p322) target = $region32
        $region31: #{nafblock_forward.2} parent=11 // pred_region
          _
        $region32: #{nafblock_forward.2} parent=11 // pred_fallthru
          _
        // Predicated region
        $region33: #{nafblock_forward.2} parent=11 // pred_check
          %p325 = pneg %p239
        $region34: #{nafblock_forward.2} parent=11 // pred_check_branch
          %327 = sbr.rel (%p325) target = $region36
        $region35: #{nafblock_forward.2} parent=11 // pred_region
          _
        $region36: #{nafblock_forward.2} parent=11 // pred_fallthru
          _
      $region12: #{nafblock_forward.2} parent=5 // pred_fallthru
        _
      %p328 = scmp.lt.s32.totalorder %s17, 4
      // Predicated region
      $region37: #{nafblock_forward.2} parent=5 // pred_check
        %p329 = pneg %p328
      $region38: #{nafblock_forward.2} parent=5 // pred_check_branch
        %331 = sbr.rel (%p329) target = $region40
      $region39: #{nafblock_forward.2} parent=5 // pred_region
        // Predicated region
        $region41: #{nafblock_forward.2} parent=39 // pred_check
          %p332 = pneg %p51
        $region42: #{nafblock_forward.2} parent=39 // pred_check_branch
          %334 = sbr.rel (%p332) target = $region44
        $region43: #{nafblock_forward.2} parent=39 // pred_region
          %s335 = sand.u32 %s41, 1
          %s336 = sand.u32 %s41, 1
          %s337 = smul.addr %s336, 16
          %s338 = scalar_lea.vmem [#allocation2], %s337
          %s339 = smul.addr %s24, 4
          %s340 = sadd.s32 %s25, %s339
          %s341 = smul.addr %s340, 8
          %s342 = scalar_lea.vmem %s0, %s341
          // Predicated region
          $region45: #{nafblock_forward.2} parent=43 // pred_check
            _
          $region46: #{nafblock_forward.2} parent=43 // pred_check_branch
            %344 = sbr.rel (0) target = $region48
          $region47: #{nafblock_forward.2} parent=43 // pred_region
            // Predicated region
            $region49: #{nafblock_forward.2} parent=47 // pred_check
              _
            $region50: #{nafblock_forward.2} parent=47 // pred_check_branch
              %346 = sbr.rel (0) target = $region52
            $region51: #{nafblock_forward.2} parent=47 // pred_region
              // Predicated region
              $region64: #{nafblock_forward.2} parent=51 // pred_check
                _
              $region65: #{nafblock_forward.2} parent=51 // pred_check_branch
                %364 = sbr.rel (0) target = $region67
              $region66: #{nafblock_forward.2} parent=51 // pred_region
                loop: start=0, step=1, limit=1
                $region68: #{nafblock_forward.2} parent=66 // loop_pre_header
                  _
                $region69: #{nafblock_forward.2} parent=66 // loop_header
                  %s366 = sphi 0, %s370
                  %p367 = scmp.ge.s32.totalorder %s366, 1
                  %s371 = sphi %s342, %s342
                  %s372 = sphi %s338, %s338
                $region70: #{nafblock_forward.2} parent=66 // loop_header_branch
                  %369 = sbr.rel (%p367) target = $region74
                $region71: #{nafblock_forward.2} parent=66 // loop_body
                  %v373 = vld [vmem:[%s371] sm:$0xff]
                  %374 = vst [vmem:[%s372] sm:$0xff] %v373
                  %v375 = vld [vmem:[%s371 + $0x10] sm:$0xff]
                  %376 = vst [vmem:[%s372 + $0x8] sm:$0xff] %v375
                $region72: #{nafblock_forward.2} parent=66 // loop_footer
                  %s370 = sadd.s32 1, %s366
                $region73: #{nafblock_forward.2} parent=66 // loop_footer_branch
                  %365 = sbr.rel target = $region69
                $region74: #{nafblock_forward.2} parent=66 // loop_exit
                  _
              $region67: #{nafblock_forward.2} parent=51 // pred_fallthru
                _
              // Predicated region
              $region75: #{nafblock_forward.2} parent=51 // pred_check
                _
              $region76: #{nafblock_forward.2} parent=51 // pred_check_branch
                %378 = sbr.rel target = $region78
              $region77: #{nafblock_forward.2} parent=51 // pred_region
                _
              $region78: #{nafblock_forward.2} parent=51 // pred_fallthru
                _
            $region52: #{nafblock_forward.2} parent=47 // pred_fallthru
              _
            // Predicated region
            $region53: #{nafblock_forward.2} parent=47 // pred_check
              _
            $region54: #{nafblock_forward.2} parent=47 // pred_check_branch
              %348 = sbr.rel target = $region56
            $region55: #{nafblock_forward.2} parent=47 // pred_region
              %s350 = ssub.s32 256, 1
              loop: start=0, step=1, limit=1
              $region57: #{nafblock_forward.2} parent=55 // loop_pre_header
                _
              $region58: #{nafblock_forward.2} parent=55 // loop_header
                %s352 = sphi 0, %s356
                %p353 = scmp.ge.s32.totalorder %s352, 1
                %s357 = sphi %s342, %s342
                %s358 = sphi %s338, %s338
              $region59: #{nafblock_forward.2} parent=55 // loop_header_branch
                %355 = sbr.rel (%p353) target = $region63
              $region60: #{nafblock_forward.2} parent=55 // loop_body
                %v359 = vld [vmem:[%s357] sm:%s350]
                %360 = vst [vmem:[%s358] sm:%s350] %v359
                %v361 = vld [vmem:[%s357 + $0x10] sm:%s350]
                %362 = vst [vmem:[%s358 + $0x8] sm:%s350] %v361
              $region61: #{nafblock_forward.2} parent=55 // loop_footer
                %s356 = sadd.s32 1, %s352
              $region62: #{nafblock_forward.2} parent=55 // loop_footer_branch
                %351 = sbr.rel target = $region58
              $region63: #{nafblock_forward.2} parent=55 // loop_exit
                _
            $region56: #{nafblock_forward.2} parent=47 // pred_fallthru
              _
          $region48: #{nafblock_forward.2} parent=43 // pred_fallthru
            _
          %379 = vnop
        $region44: #{nafblock_forward.2} parent=39 // pred_fallthru
          _
        // Predicated region
        $region79: #{nafblock_forward.2} parent=39 // pred_check
          %p380 = pneg %p79
        $region80: #{nafblock_forward.2} parent=39 // pred_check_branch
          %382 = sbr.rel (%p380) target = $region82
        $region81: #{nafblock_forward.2} parent=39 // pred_region
          %p383 = scmp.lt.s32.totalorder %s24, 1
          %s384 = scalar_select %p383, %s24, 1
          %p385 = scmp.lt.s32.totalorder %s25, 1
          %s386 = scalar_select %p385, %s25, 1
          %s387 = smul.addr %s386, 2
          %s388 = smul.addr %s384, 4
          %s389 = sadd.s32 %s387, %s388
          %s390 = smul.addr %s389, 8
          %s391 = scalar_lea.vmem %s1, %s390
        $region82: #{nafblock_forward.2} parent=39 // pred_fallthru
          _
        // Predicated region
        $region83: #{nafblock_forward.2} parent=39 // pred_check
          %p392 = pneg %p107
        $region84: #{nafblock_forward.2} parent=39 // pred_check_branch
          %394 = sbr.rel (%p392) target = $region86
        $region85: #{nafblock_forward.2} parent=39 // pred_region
          %p395 = scmp.lt.s32.totalorder %s24, 1
          %s396 = scalar_select %p395, %s24, 1
          %p397 = scmp.lt.s32.totalorder %s25, 1
          %s398 = scalar_select %p397, %s25, 1
          %s399 = smul.addr %s398, 2
          %s400 = smul.addr %s396, 4
          %s401 = sadd.s32 %s399, %s400
          %s402 = smul.addr %s401, 8
          %s403 = scalar_lea.vmem %s2, %s402
        $region86: #{nafblock_forward.2} parent=39 // pred_fallthru
          _
      $region40: #{nafblock_forward.2} parent=5 // pred_fallthru
        _
      %p404 = scmp.le.s32.totalorder 1, %s17
      %p405 = scmp.lt.s32.totalorder %s17, 5
      %p406 = pnand %p404, %p405
      %p407 = pneg %p406
      // Predicated region
      $region87: #{nafblock_forward.2} parent=5 // pred_check
        _
      $region88: #{nafblock_forward.2} parent=5 // pred_check_branch
        %409 = sbr.rel (%p406) target = $region90
      $region89: #{nafblock_forward.2} parent=5 // pred_region
        %s410 = ssub.s32 %s17, 1
        %s411 = sand.u32 %s44, 1
        %s412 = sand.u32 %s44, 1
        %s413 = smul.addr %s412, 16
        %s414 = scalar_lea.vmem [#allocation2], %s413
        // Predicated region
        $region91: #{nafblock_forward.2} parent=89 // pred_check
          %p415 = pneg %p57
        $region92: #{nafblock_forward.2} parent=89 // pred_check_branch
          %417 = sbr.rel (%p415) target = $region94
        $region93: #{nafblock_forward.2} parent=89 // pred_region
          _
        $region94: #{nafblock_forward.2} parent=89 // pred_fallthru
          _
        %s418 = sand.u32 %s44, 1
        %s419 = sand.u32 %s44, 1
        %s420 = smul.addr %s419, 16
        %s421 = scalar_lea.vmem [#allocation2], %s420
        %p422 = pneg %p57
        %p423 = pneg %p54
        %p424 = scmp.lt.s32.totalorder %s26, 1
        %s425 = scalar_select %p424, %s26, 1
        %p426 = scmp.lt.s32.totalorder %s27, 1
        %s427 = scalar_select %p426, %s27, 1
        %s428 = smul.addr %s427, 2
        %s429 = smul.addr %s425, 4
        %s430 = sadd.s32 %s428, %s429
        %s431 = smul.addr %s430, 8
        %s432 = scalar_lea.vmem %s1, %s431
        %p433 = pneg %p85
        %p434 = pneg %p82
        %p435 = scmp.lt.s32.totalorder %s26, 1
        %s436 = scalar_select %p435, %s26, 1
        %p437 = scmp.lt.s32.totalorder %s27, 1
        %s438 = scalar_select %p437, %s27, 1
        %s439 = smul.addr %s438, 2
        %s440 = smul.addr %s436, 4
        %s441 = sadd.s32 %s439, %s440
        %s442 = smul.addr %s441, 8
        %s443 = scalar_lea.vmem %s2, %s442
        %p444 = pneg %p113
        %p445 = pneg %p110
        %p446 = pneg %p134
        %p447 = pneg %p131
        %p448 = pneg %p155
        %p449 = pneg %p152
        %p450 = pneg %p176
        %p451 = pneg %p173
        %p452 = pneg %p197
        %p453 = pneg %p194
        %p454 = pneg %p218
        %p455 = pneg %p215
        %p456 = pneg %p239
        %p457 = pneg %p236
        %p458 = pneg %p267
        %p459 = pneg %p264
        %s460 = sand.u32 %s254, 1
        %s461 = sand.u32 %s254, 1
        %s462 = smul.addr %s461, 16
        %s463 = scalar_lea.vmem [#allocation3], %s462
        %p464 = pneg %p295
        %p465 = pneg %p292
        %p466 = scmp.lt.s32.totalorder %s26, 1
        %s467 = scalar_select %p466, %s26, 1
        %p468 = scmp.lt.s32.totalorder %s27, 1
        %s469 = scalar_select %p468, %s27, 1
        %s470 = smul.addr %s469, 2
        %s471 = smul.addr %s467, 4
        %s472 = sadd.s32 %s470, %s471
        %s473 = smul.addr %s472, 8
        %s474 = scalar_lea.vmem %s10, %s473
        %p475 = scmp.lt.s32.totalorder %s26, 1
        %s476 = scalar_select %p475, %s26, 1
        %p477 = scmp.lt.s32.totalorder %s27, 1
        %s478 = scalar_select %p477, %s27, 1
        %s479 = smul.addr %s478, 2
        %s480 = smul.addr %s476, 4
        %s481 = sadd.s32 %s479, %s480
        %s482 = smul.addr %s481, 8
        %s483 = scalar_lea.vmem %s1, %s482
        %p484 = scmp.lt.s32.totalorder %s26, 1
        %s485 = scalar_select %p484, %s26, 1
        %p486 = scmp.lt.s32.totalorder %s27, 1
        %s487 = scalar_select %p486, %s27, 1
        %s488 = smul.addr %s487, 2
        %s489 = smul.addr %s485, 4
        %s490 = sadd.s32 %s488, %s489
        %s491 = smul.addr %s490, 8
        %s492 = scalar_lea.vmem %s2, %s491
        %p493 = scmp.lt.s32.totalorder %s26, 1
        %s494 = scalar_select %p493, %s26, 1
        %p495 = scmp.lt.s32.totalorder %s27, 1
        %s496 = scalar_select %p495, %s27, 1
        %s497 = smul.addr %s496, 2
        %s498 = smul.addr %s494, 4
        %s499 = sadd.s32 %s497, %s498
        %s500 = smul.addr %s499, 8
        %s501 = scalar_lea.vmem %s10, %s500
        %v502 = vld [vmem:[%s483] sm:$0xff]
        %v503 = vld [vmem:[%s483 + $0x8] sm:$0xff]
        %v504 = vld [vmem:[%s414] sm:$0xff]
        %v505 = vld [vmem:[%s414 + $0x8] sm:$0xff]
        %v506 = vld [vmem:[%s492] sm:$0xff]
        %v507 = vld [vmem:[%s492 + $0x8] sm:$0xff]
        %510 = vrot.lane.b32.xlu0 %v504, 16
        %v511 = vpop.permute.xlu0 %510
        %512 = vrot.lane.b32.xlu0 %v505, 16
        %v513 = vpop.permute.xlu0 %512
        %518 = vrot.lane.b32.xlu0 %v506, 16
        %v519 = vpop.permute.xlu0 %518
        %520 = vrot.lane.b32.xlu0 %v507, 16
        %v521 = vpop.permute.xlu0 %520
        %vm524 = vcmask 130048
        %v525 = vsel %vm524, %v502, %v511
        %v526 = vsel %vm524, %v503, %v513
        %v527 = vsel %vm524, %v511, %v519
        %v528 = vsel %vm524, %v513, %v521
        %v529 = vadd.f32 %v525, %v526
        %v530 = vrot.slane %v529, 4
        %v531 = vadd.f32 %v529, %v530
        %v532 = vrot.slane %v531, 2
        %v533 = vadd.f32 %v531, %v532
        %v534 = vrot.slane %v533, 1
        %v535 = vadd.f32 %v533, %v534
        %vm536 = vcmask 261120
        %v537 = vsel %vm536, %v527, 0.0
        %v538 = vsel %vm536, %v528, 0.0
        %v539 = vadd.f32 %v537, %v538
        %v540 = vrot.slane %v539, 4
        %v541 = vadd.f32 %v539, %v540
        %v542 = vrot.slane %v541, 2
        %v543 = vadd.f32 %v541, %v542
        %v544 = vrot.slane %v543, 1
        %v545 = vadd.f32 %v543, %v544
        %v546 = vrcp.pop 16.0
        %v547 = vmul.f32 16.0, %v546
        %v548 = vsub.f32 1.0, %v547
        %v549 = vmul.f32 %v546, %v548
        %v550 = vadd.f32 %v546, %v549
        %vm551 = vweird.f32 %v546
        %v552 = vsel %vm551, %v546, %v550
        %v553 = vmul.f32 %v535, %v552
        %v554 = vmul.f32 %v545, %v552
        %v555 = vmul.f32 %v525, %v525
        %v556 = vmul.f32 %v527, %v527
        %v557 = vmul.f32 %v526, %v526
        %v558 = vmul.f32 %v528, %v528
        %v559 = vadd.f32 %v555, %v557
        %v560 = vrot.slane %v559, 4
        %v561 = vadd.f32 %v559, %v560
        %v562 = vrot.slane %v561, 2
        %v563 = vadd.f32 %v561, %v562
        %v564 = vrot.slane %v563, 1
        %v565 = vadd.f32 %v563, %v564
        %v566 = vsel %vm536, %v556, 0.0
        %v567 = vsel %vm536, %v558, 0.0
        %v568 = vadd.f32 %v566, %v567
        %v569 = vrot.slane %v568, 4
        %v570 = vadd.f32 %v568, %v569
        %v571 = vrot.slane %v570, 2
        %v572 = vadd.f32 %v570, %v571
        %v573 = vrot.slane %v572, 1
        %v574 = vadd.f32 %v572, %v573
        %v575 = vmul.f32 %v565, %v552
        %v576 = vmul.f32 %v574, %v552
        %v577 = vmul.f32 %v553, %v553
        %v578 = vmul.f32 %v554, %v554
        %v579 = vsub.f32 %v575, %v577
        %v580 = vsub.f32 %v576, %v578
        %v581 = vmax.f32 %v579, 0.0
        %v582 = vmax.f32 %v580, 0.0
        %v583 = vsub.f32 %v525, %v553
        %v584 = vsub.f32 %v527, %v554
        %v585 = vsub.f32 %v526, %v553
        %v586 = vsub.f32 %v528, %v554
        %v587 = vadd.f32 %v581, 1e-06
        %v588 = vadd.f32 %v582, 1e-06
        %v589 = vrsqrt.pop %v587
        %v590 = vmul.f32 %v589, %v587
        %v591 = vmul.f32 %v590, %v589
        %v592 = vmul.f32 0.5, %v591
        %v593 = vsub.f32 1.5, %v592
        %v594 = vmul.f32 %v589, %v593
        %vm595 = vweird.f32 %v587
        %vm596 = vweird.f32 %v589
        %vm597 = vmor %vm595, %vm596
        %v598 = vsel %vm597, %v589, %v594
        %v599 = vrsqrt.pop %v588
        %v600 = vmul.f32 %v599, %v588
        %v601 = vmul.f32 %v600, %v599
        %v602 = vmul.f32 0.5, %v601
        %v603 = vsub.f32 1.5, %v602
        %v604 = vmul.f32 %v599, %v603
        %vm605 = vweird.f32 %v588
        %vm606 = vweird.f32 %v599
        %vm607 = vmor %vm605, %vm606
        %v608 = vsel %vm607, %v599, %v604
        %v609 = vmul.f32 %v583, %v598
        %v610 = vmul.f32 %v584, %v608
        %v611 = vmul.f32 %v585, %v598
        %v612 = vmul.f32 %v586, %v608
        %v613 = vld [vmem:[%s3] sm:$0xff]
        %v614 = vld [vmem:[%s3 + $0x8] sm:$0xff]
        %616 = vset.pattern.permute.xlu0 0
        %617 = vperm.xlu0 %616, %v613
        %v618 = vpop.permute.xlu0 %617
        %621 = vset.pattern.permute.xlu0 0
        %622 = vperm.xlu0 %621, %v614
        %v623 = vpop.permute.xlu0 %622
        %v625 = vmul.f32 %v609, %v618
        %v626 = vmul.f32 %v610, %v618
        %v627 = vmul.f32 %v611, %v623
        %v628 = vmul.f32 %v612, %v623
        %v629 = vld [vmem:[%s4] sm:$0xff]
        %v630 = vld [vmem:[%s4 + $0x8] sm:$0xff]
        %632 = vset.pattern.permute.xlu0 0
        %633 = vperm.xlu0 %632, %v629
        %v634 = vpop.permute.xlu0 %633
        %637 = vset.pattern.permute.xlu0 0
        %638 = vperm.xlu0 %637, %v630
        %v639 = vpop.permute.xlu0 %638
        %v641 = vadd.f32 %v625, %v634
        %v642 = vadd.f32 %v626, %v634
        %v643 = vadd.f32 %v627, %v639
        %v644 = vadd.f32 %v628, %v639
        %v645 = vld [vmem:[%s5] sm:$0xff]
        %v646 = vld [vmem:[%s5 + $0x8] sm:$0xff]
        %v647 = vld [vmem:[%s5 + $0x10] sm:$0xff]
        %v648 = vld [vmem:[%s5 + $0x18] sm:$0xff]
        %v649 = vld [vmem:[%s6] sm:$0xff]
        %v650 = vld [vmem:[%s6 + $0x8] sm:$0xff]
        %v651 = vld [vmem:[%s6 + $0x10] sm:$0xff]
        %v652 = vld [vmem:[%s6 + $0x18] sm:$0xff]
        %654 = vset.pattern.permute.xlu0 0
        %655 = vperm.xlu0 %654, %v649
        %v656 = vpop.permute.xlu0 %655
        %659 = vset.pattern.permute.xlu0 0
        %660 = vperm.xlu0 %659, %v650
        %v661 = vpop.permute.xlu0 %660
        %664 = vset.pattern.permute.xlu0 0
        %665 = vperm.xlu0 %664, %v651
        %v666 = vpop.permute.xlu0 %665
        %669 = vset.pattern.permute.xlu0 0
        %670 = vperm.xlu0 %669, %v652
        %v671 = vpop.permute.xlu0 %670
        %v674 = vsel %vm524, %v645, 0
        %v677 = vsel %vm524, %v646, 0
        %v680 = vsel %vm524, %v647, 0
        %v683 = vsel %vm524, %v648, 0
        %685 = vmatpush.msra.mxu0 0.0
        %686 = vmatpush.msra.mxu0 0.0
        %687 = vmatpush.msra.mxu0 0.0
        %688 = vmatpush.msra.mxu0 0.0
        %689 = vmatpush.msra.mxu0 0.0
        %690 = vmatpush.msra.mxu0 0.0
        %691 = vmatpush.msra.mxu0 0.0
        %692 = vmatpush.msra.mxu0 0.0
        %693 = vmatpush.msra.mxu0 0.0
        %694 = vmatpush.msra.mxu0 0.0
        %695 = vmatpush.msra.mxu0 0.0
        %696 = vmatpush.msra.mxu0 0.0
        %697 = vmatpush.msra.mxu0 0.0
        %698 = vmatpush.msra.mxu0 0.0
        %699 = vmatpush.msra.mxu0 %v643
        %700 = vmatpush.msra.mxu0 %v641
        %701 = vmatmul.f32.gmra.mxu0 %v674
        %v702 = vpop.f32.mrf.mxu0
        %v703 = vadd.f32 %v656, %v702
        %704 = vmatmul.f32.gmra.mxu0 %v677
        %v705 = vpop.f32.mrf.mxu0
        %v706 = vadd.f32 %v661, %v705
        %707 = vmatmul.f32.gmra.mxu0 %v680
        %v708 = vpop.f32.mrf.mxu0
        %v709 = vadd.f32 %v666, %v708
        %710 = vmatmul.f32.gmra.mxu0 %v683
        %v711 = vpop.f32.mrf.mxu0
        %v712 = vadd.f32 %v671, %v711
        %713 = vdwg.mxu0
        %714 = vmatpush.msra.mxu0 0.0
        %715 = vmatpush.msra.mxu0 0.0
        %716 = vmatpush.msra.mxu0 0.0
        %717 = vmatpush.msra.mxu0 0.0
        %718 = vmatpush.msra.mxu0 0.0
        %719 = vmatpush.msra.mxu0 0.0
        %720 = vmatpush.msra.mxu0 0.0
        %721 = vmatpush.msra.mxu0 0.0
        %722 = vmatpush.msra.mxu0 0.0
        %723 = vmatpush.msra.mxu0 0.0
        %724 = vmatpush.msra.mxu0 0.0
        %725 = vmatpush.msra.mxu0 0.0
        %726 = vmatpush.msra.mxu0 0.0
        %727 = vmatpush.msra.mxu0 0.0
        %728 = vmatpush.msra.mxu0 %v644
        %729 = vmatpush.msra.mxu0 %v642
        %730 = vmatmul.f32.gmra.mxu0 %v674
        %v731 = vpop.f32.mrf.mxu0
        %v732 = vadd.f32 %v656, %v731
        %733 = vmatmul.f32.gmra.mxu0 %v677
        %v734 = vpop.f32.mrf.mxu0
        %v735 = vadd.f32 %v661, %v734
        %736 = vmatmul.f32.gmra.mxu0 %v680
        %v737 = vpop.f32.mrf.mxu0
        %v738 = vadd.f32 %v666, %v737
        %739 = vmatmul.f32.gmra.mxu0 %v683
        %v740 = vpop.f32.mrf.mxu0
        %v741 = vadd.f32 %v671, %v740
        %742 = vdwg.mxu0
        %v743 = vlaneseq
        %v744 = vand.u32 %v743, 127
        %v745 = vadd.s32 %v744, 128
        %p746 = scmp.eq.s32.totalorder %s27, 0
        %vm747 = vcmp.lt.s32.totalorder %v744, 16
        %vm748 = vcmp.lt.s32.totalorder %v745, 16
        %s749 = scalar_select %p746, 1, 0
        %v750 = vstv %s749
        %vm751 = vcmp.eq.s32.totalorder %v750, 1
        %vm752 = vmand %vm751, %vm747
        %vm753 = vmand %vm751, %vm748
        %v754 = vsel %vm752, 1, 0
        %v755 = vsel %vm753, 1, 0
        %vm756 = vcmp.eq.s32.totalorder %v754, 1
        %vm757 = vcmp.eq.s32.totalorder %v755, 1
        %v758 = vsel %vm756, 0.0, %v703
        %v759 = vsel %vm757, 0.0, %v732
        %v760 = vsel %vm756, 0.0, %v706
        %v761 = vsel %vm757, 0.0, %v735
        %v762 = vsel %vm756, 0.0, %v709
        %v763 = vsel %vm757, 0.0, %v738
        %v764 = vsel %vm756, 0.0, %v712
        %v765 = vsel %vm757, 0.0, %v741
        %p766 = scmp.eq.s32.totalorder %s27, 1
        %vm767 = vcmp.ge.s32.totalorder %v744, 144
        %vm768 = vcmp.ge.s32.totalorder %v745, 144
        %s769 = scalar_select %p766, 1, 0
        %v770 = vstv %s769
        %vm771 = vcmp.eq.s32.totalorder %v770, 1
        %vm772 = vmand %vm771, %vm767
        %vm773 = vmand %vm771, %vm768
        %v774 = vsel %vm772, 1, 0
        %v775 = vsel %vm773, 1, 0
        %vm776 = vcmp.eq.s32.totalorder %v774, 1
        %vm777 = vcmp.eq.s32.totalorder %v775, 1
        %v778 = vsel %vm776, 0.0, %v758
        %v779 = vsel %vm777, 0.0, %v759
        %v780 = vsel %vm776, 0.0, %v760
        %v781 = vsel %vm777, 0.0, %v761
        %v782 = vsel %vm776, 0.0, %v762
        %v783 = vsel %vm777, 0.0, %v763
        %v784 = vsel %vm776, 0.0, %v764
        %v785 = vsel %vm777, 0.0, %v765
        %vm786 = vcmp.lt.s32.totalorder %v744, 0
        %v787 = vsub.s32 0, %v744
        %v788 = vsel %vm786, %v787, %v744
        %v789 = vshrl.u32 %v788, 4
        %v790 = vand.u32 %v788, 15
        %v791 = vsub.s32 0, %v790
        %v792 = vsel %vm786, %v791, %v790
        %vm793 = vcmp.lt.s32.totalorder %v745, 0
        %v794 = vsub.s32 0, %v745
        %v795 = vsel %vm793, %v794, %v745
        %v796 = vshrl.u32 %v795, 4
        %v797 = vand.u32 %v795, 15
        %v798 = vsub.s32 0, %v797
        %v799 = vsel %vm793, %v798, %v797
        %vm800 = vcmp.ne.s32.totalorder %v792, 0
        %vm801 = vcmp.ne.s32.totalorder %v799, 0
        %vm802 = vcmp.lt.s32.totalorder %v792, 0
        %vm803 = vcmp.lt.s32.totalorder %v799, 0
        %vm804 = vmand %vm802, %vm800
        %vm805 = vmand %vm803, %vm801
        %v806 = vadd.s32 %v792, 16
        %v807 = vadd.s32 %v799, 16
        %v808 = vsel %vm804, %v806, %v792
        %v809 = vsel %vm805, %v807, %v799
        %vm810 = vcmp.ge.s32.totalorder %v808, 1
        %vm811 = vcmp.ge.s32.totalorder %v809, 1
        %820 = vrot.lane.b32.xlu0 %v778, 1
        %v821 = vpop.permute.xlu0 %820
        %822 = vrot.lane.b32.xlu0 %v779, 1
        %v823 = vpop.permute.xlu0 %822
        %824 = vrot.lane.b32.xlu0 %v780, 1
        %v825 = vpop.permute.xlu0 %824
        %826 = vrot.lane.b32.xlu0 %v781, 1
        %v827 = vpop.permute.xlu0 %826
        %828 = vrot.lane.b32.xlu0 %v782, 1
        %v829 = vpop.permute.xlu0 %828
        %830 = vrot.lane.b32.xlu0 %v783, 1
        %v831 = vpop.permute.xlu0 %830
        %832 = vrot.lane.b32.xlu0 %v784, 1
        %v833 = vpop.permute.xlu0 %832
        %834 = vrot.lane.b32.xlu0 %v785, 1
        %v835 = vpop.permute.xlu0 %834
        %vm836 = vcmask 7168
        %v837 = vsel %vm836, %v821, %v823
        %v838 = vsel %vm836, %v825, %v827
        %v839 = vsel %vm836, %v829, %v831
        %v840 = vsel %vm836, %v833, %v835
        %v849 = vsel %vm836, 0.0, %v821
        %v850 = vsel %vm836, 0.0, %v825
        %v851 = vsel %vm836, 0.0, %v829
        %v852 = vsel %vm836, 0.0, %v833
        %v853 = vsel %vm810, 1, 0
        %v854 = vsel %vm811, 1, 0
        %vm855 = vcmp.eq.s32.totalorder %v853, 1
        %vm856 = vcmp.eq.s32.totalorder %v854, 1
        %v857 = vsel %vm855, %v849, 0.0
        %v858 = vsel %vm856, %v837, 0.0
        %v859 = vsel %vm855, %v850, 0.0
        %v860 = vsel %vm856, %v838, 0.0
        %v861 = vsel %vm855, %v851, 0.0
        %v862 = vsel %vm856, %v839, 0.0
        %v863 = vsel %vm855, %v852, 0.0
        %v864 = vsel %vm856, %v840, 0.0
        %vm865 = vcmp.le.s32.totalorder %v808, 14
        %vm866 = vcmp.le.s32.totalorder %v809, 14
        %867 = vrot.lane.b32.xlu0 %v778, 127
        %v868 = vpop.permute.xlu0 %867
        %869 = vrot.lane.b32.xlu0 %v779, 127
        %v870 = vpop.permute.xlu0 %869
        %871 = vrot.lane.b32.xlu0 %v780, 127
        %v872 = vpop.permute.xlu0 %871
        %873 = vrot.lane.b32.xlu0 %v781, 127
        %v874 = vpop.permute.xlu0 %873
        %875 = vrot.lane.b32.xlu0 %v782, 127
        %v876 = vpop.permute.xlu0 %875
        %877 = vrot.lane.b32.xlu0 %v783, 127
        %v878 = vpop.permute.xlu0 %877
        %879 = vrot.lane.b32.xlu0 %v784, 127
        %v880 = vpop.permute.xlu0 %879
        %881 = vrot.lane.b32.xlu0 %v785, 127
        %v882 = vpop.permute.xlu0 %881
        %vm883 = vcmask 1039360
        %v884 = vsel %vm883, %v868, %v870
        %v885 = vsel %vm883, %v872, %v874
        %v886 = vsel %vm883, %v876, %v878
        %v887 = vsel %vm883, %v880, %v882
        %vm896 = vcmask 252928
        %v897 = vsel %vm896, %v870, 0.0
        %v898 = vsel %vm896, %v874, 0.0
        %v899 = vsel %vm896, %v878, 0.0
        %v900 = vsel %vm896, %v882, 0.0
        %v901 = vsel %vm865, 1, 0
        %v902 = vsel %vm866, 1, 0
        %vm903 = vcmp.eq.s32.totalorder %v901, 1
        %vm904 = vcmp.eq.s32.totalorder %v902, 1
        %v905 = vsel %vm903, %v884, 0.0
        %v906 = vsel %vm904, %v897, 0.0
        %v907 = vsel %vm903, %v885, 0.0
        %v908 = vsel %vm904, %v898, 0.0
        %v909 = vsel %vm903, %v886, 0.0
        %v910 = vsel %vm904, %v899, 0.0
        %v911 = vsel %vm903, %v887, 0.0
        %v912 = vsel %vm904, %v900, 0.0
        %v913 = vld [vmem:[%s7] sm:$0xff]
        %v914 = vld [vmem:[%s7 + $0x8] sm:$0xff]
        %v915 = vld [vmem:[%s7 + $0x10] sm:$0xff]
        %v916 = vld [vmem:[%s7 + $0x18] sm:$0xff]
        %918 = vset.pattern.permute.xlu0 0
        %919 = vperm.xlu0 %918, %v913
        %v920 = vpop.permute.xlu0 %919
        %923 = vset.pattern.permute.xlu0 0
        %924 = vperm.xlu0 %923, %v914
        %v925 = vpop.permute.xlu0 %924
        %928 = vset.pattern.permute.xlu0 0
        %929 = vperm.xlu0 %928, %v915
        %v930 = vpop.permute.xlu0 %929
        %933 = vset.pattern.permute.xlu0 0
        %934 = vperm.xlu0 %933, %v916
        %v935 = vpop.permute.xlu0 %934
        %v937 = vmul.f32 %v857, %v920
        %v938 = vmul.f32 %v859, %v925
        %v939 = vmul.f32 %v861, %v930
        %v940 = vmul.f32 %v863, %v935
        %v941 = vadd.f32 %v937, 0.0
        %v942 = vadd.f32 %v938, 0.0
        %v943 = vadd.f32 %v939, 0.0
        %v944 = vadd.f32 %v940, 0.0
        %945 = vset.pattern.permute.xlu0 1
        %946 = vperm.xlu0 %945, %v913
        %v947 = vpop.permute.xlu0 %946
        %949 = vset.pattern.permute.xlu0 1
        %950 = vperm.xlu0 %949, %v914
        %v951 = vpop.permute.xlu0 %950
        %953 = vset.pattern.permute.xlu0 1
        %954 = vperm.xlu0 %953, %v915
        %v955 = vpop.permute.xlu0 %954
        %957 = vset.pattern.permute.xlu0 1
        %958 = vperm.xlu0 %957, %v916
        %v959 = vpop.permute.xlu0 %958
        %v961 = vmul.f32 %v778, %v947
        %v962 = vmul.f32 %v780, %v951
        %v963 = vmul.f32 %v782, %v955
        %v964 = vmul.f32 %v784, %v959
        %v965 = vadd.f32 %v941, %v961
        %v966 = vadd.f32 %v942, %v962
        %v967 = vadd.f32 %v943, %v963
        %v968 = vadd.f32 %v944, %v964
        %969 = vset.pattern.permute.xlu0 2
        %970 = vperm.xlu0 %969, %v913
        %v971 = vpop.permute.xlu0 %970
        %973 = vset.pattern.permute.xlu0 2
        %974 = vperm.xlu0 %973, %v914
        %v975 = vpop.permute.xlu0 %974
        %977 = vset.pattern.permute.xlu0 2
        %978 = vperm.xlu0 %977, %v915
        %v979 = vpop.permute.xlu0 %978
        %981 = vset.pattern.permute.xlu0 2
        %982 = vperm.xlu0 %981, %v916
        %v983 = vpop.permute.xlu0 %982
        %v985 = vmul.f32 %v905, %v971
        %v986 = vmul.f32 %v907, %v975
        %v987 = vmul.f32 %v909, %v979
        %v988 = vmul.f32 %v911, %v983
        %v989 = vadd.f32 %v965, %v985
        %v990 = vadd.f32 %v966, %v986
        %v991 = vadd.f32 %v967, %v987
        %v992 = vadd.f32 %v968, %v988
        %993 = vset.pattern.permute.xlu0 3
        %994 = vperm.xlu0 %993, %v913
        %v995 = vpop.permute.xlu0 %994
        %997 = vset.pattern.permute.xlu0 3
        %998 = vperm.xlu0 %997, %v914
        %v999 = vpop.permute.xlu0 %998
        %1001 = vset.pattern.permute.xlu0 3
        %1002 = vperm.xlu0 %1001, %v915
        %v1003 = vpop.permute.xlu0 %1002
        %1005 = vset.pattern.permute.xlu0 3
        %1006 = vperm.xlu0 %1005, %v916
        %v1007 = vpop.permute.xlu0 %1006
        %v1009 = vmul.f32 %v857, %v995
        %v1010 = vmul.f32 %v858, %v995
        %v1011 = vmul.f32 %v859, %v999
        %v1012 = vmul.f32 %v860, %v999
        %v1013 = vmul.f32 %v861, %v1003
        %v1014 = vmul.f32 %v862, %v1003
        %v1015 = vmul.f32 %v863, %v1007
        %v1016 = vmul.f32 %v864, %v1007
        %1025 = vrot.lane.b32.xlu0 %v1009, 112
        %v1026 = vpop.permute.xlu0 %1025
        %1027 = vrot.lane.b32.xlu0 %v1010, 112
        %v1028 = vpop.permute.xlu0 %1027
        %1029 = vrot.lane.b32.xlu0 %v1011, 112
        %v1030 = vpop.permute.xlu0 %1029
        %1031 = vrot.lane.b32.xlu0 %v1012, 112
        %v1032 = vpop.permute.xlu0 %1031
        %1033 = vrot.lane.b32.xlu0 %v1013, 112
        %v1034 = vpop.permute.xlu0 %1033
        %1035 = vrot.lane.b32.xlu0 %v1014, 112
        %v1036 = vpop.permute.xlu0 %1035
        %1037 = vrot.lane.b32.xlu0 %v1015, 112
        %v1038 = vpop.permute.xlu0 %1037
        %1039 = vrot.lane.b32.xlu0 %v1016, 112
        %v1040 = vpop.permute.xlu0 %1039
        %vm1041 = vcmask 916480
        %v1042 = vsel %vm1041, %v1026, %v1028
        %v1043 = vsel %vm1041, %v1030, %v1032
        %v1044 = vsel %vm1041, %v1034, %v1036
        %v1045 = vsel %vm1041, %v1038, %v1040
        %v1050 = vadd.f32 %v989, %v1042
        %v1051 = vadd.f32 %v990, %v1043
        %v1052 = vadd.f32 %v991, %v1044
        %v1053 = vadd.f32 %v992, %v1045
        %1054 = vset.pattern.permute.xlu0 4
        %1055 = vperm.xlu0 %1054, %v913
        %v1056 = vpop.permute.xlu0 %1055
        %1058 = vset.pattern.permute.xlu0 4
        %1059 = vperm.xlu0 %1058, %v914
        %v1060 = vpop.permute.xlu0 %1059
        %1062 = vset.pattern.permute.xlu0 4
        %1063 = vperm.xlu0 %1062, %v915
        %v1064 = vpop.permute.xlu0 %1063
        %1066 = vset.pattern.permute.xlu0 4
        %1067 = vperm.xlu0 %1066, %v916
        %v1068 = vpop.permute.xlu0 %1067
        %v1070 = vmul.f32 %v778, %v1056
        %v1071 = vmul.f32 %v779, %v1056
        %v1072 = vmul.f32 %v780, %v1060
        %v1073 = vmul.f32 %v781, %v1060
        %v1074 = vmul.f32 %v782, %v1064
        %v1075 = vmul.f32 %v783, %v1064
        %v1076 = vmul.f32 %v784, %v1068
        %v1077 = vmul.f32 %v785, %v1068
        %1086 = vrot.lane.b32.xlu0 %v1070, 112
        %v1087 = vpop.permute.xlu0 %1086
        %1088 = vrot.lane.b32.xlu0 %v1071, 112
        %v1089 = vpop.permute.xlu0 %1088
        %1090 = vrot.lane.b32.xlu0 %v1072, 112
        %v1091 = vpop.permute.xlu0 %1090
        %1092 = vrot.lane.b32.xlu0 %v1073, 112
        %v1093 = vpop.permute.xlu0 %1092
        %1094 = vrot.lane.b32.xlu0 %v1074, 112
        %v1095 = vpop.permute.xlu0 %1094
        %1096 = vrot.lane.b32.xlu0 %v1075, 112
        %v1097 = vpop.permute.xlu0 %1096
        %1098 = vrot.lane.b32.xlu0 %v1076, 112
        %v1099 = vpop.permute.xlu0 %1098
        %1100 = vrot.lane.b32.xlu0 %v1077, 112
        %v1101 = vpop.permute.xlu0 %1100
        %v1102 = vsel %vm1041, %v1087, %v1089
        %v1103 = vsel %vm1041, %v1091, %v1093
        %v1104 = vsel %vm1041, %v1095, %v1097
        %v1105 = vsel %vm1041, %v1099, %v1101
        %v1110 = vadd.f32 %v1050, %v1102
        %v1111 = vadd.f32 %v1051, %v1103
        %v1112 = vadd.f32 %v1052, %v1104
        %v1113 = vadd.f32 %v1053, %v1105
        %1114 = vset.pattern.permute.xlu0 5
        %1115 = vperm.xlu0 %1114, %v913
        %v1116 = vpop.permute.xlu0 %1115
        %1118 = vset.pattern.permute.xlu0 5
        %1119 = vperm.xlu0 %1118, %v914
        %v1120 = vpop.permute.xlu0 %1119
        %1122 = vset.pattern.permute.xlu0 5
        %1123 = vperm.xlu0 %1122, %v915
        %v1124 = vpop.permute.xlu0 %1123
        %1126 = vset.pattern.permute.xlu0 5
        %1127 = vperm.xlu0 %1126, %v916
        %v1128 = vpop.permute.xlu0 %1127
        %v1130 = vmul.f32 %v905, %v1116
        %v1131 = vmul.f32 %v906, %v1116
        %v1132 = vmul.f32 %v907, %v1120
        %v1133 = vmul.f32 %v908, %v1120
        %v1134 = vmul.f32 %v909, %v1124
        %v1135 = vmul.f32 %v910, %v1124
        %v1136 = vmul.f32 %v911, %v1128
        %v1137 = vmul.f32 %v912, %v1128
        %1146 = vrot.lane.b32.xlu0 %v1130, 112
        %v1147 = vpop.permute.xlu0 %1146
        %1148 = vrot.lane.b32.xlu0 %v1131, 112
        %v1149 = vpop.permute.xlu0 %1148
        %1150 = vrot.lane.b32.xlu0 %v1132, 112
        %v1151 = vpop.permute.xlu0 %1150
        %1152 = vrot.lane.b32.xlu0 %v1133, 112
        %v1153 = vpop.permute.xlu0 %1152
        %1154 = vrot.lane.b32.xlu0 %v1134, 112
        %v1155 = vpop.permute.xlu0 %1154
        %1156 = vrot.lane.b32.xlu0 %v1135, 112
        %v1157 = vpop.permute.xlu0 %1156
        %1158 = vrot.lane.b32.xlu0 %v1136, 112
        %v1159 = vpop.permute.xlu0 %1158
        %1160 = vrot.lane.b32.xlu0 %v1137, 112
        %v1161 = vpop.permute.xlu0 %1160
        %v1162 = vsel %vm1041, %v1147, %v1149
        %v1163 = vsel %vm1041, %v1151, %v1153
        %v1164 = vsel %vm1041, %v1155, %v1157
        %v1165 = vsel %vm1041, %v1159, %v1161
        %v1170 = vadd.f32 %v1110, %v1162
        %v1171 = vadd.f32 %v1111, %v1163
        %v1172 = vadd.f32 %v1112, %v1164
        %v1173 = vadd.f32 %v1113, %v1165
        %1174 = vset.pattern.permute.xlu0 6
        %1175 = vperm.xlu0 %1174, %v913
        %v1176 = vpop.permute.xlu0 %1175
        %1178 = vset.pattern.permute.xlu0 6
        %1179 = vperm.xlu0 %1178, %v914
        %v1180 = vpop.permute.xlu0 %1179
        %1182 = vset.pattern.permute.xlu0 6
        %1183 = vperm.xlu0 %1182, %v915
        %v1184 = vpop.permute.xlu0 %1183
        %1186 = vset.pattern.permute.xlu0 6
        %1187 = vperm.xlu0 %1186, %v916
        %v1188 = vpop.permute.xlu0 %1187
        %v1190 = vmul.f32 %v857, %v1176
        %v1191 = vmul.f32 %v858, %v1176
        %v1192 = vmul.f32 %v859, %v1180
        %v1193 = vmul.f32 %v860, %v1180
        %v1194 = vmul.f32 %v861, %v1184
        %v1195 = vmul.f32 %v862, %v1184
        %v1196 = vmul.f32 %v863, %v1188
        %v1197 = vmul.f32 %v864, %v1188
        %1206 = vrot.lane.b32.xlu0 %v1190, 96
        %v1207 = vpop.permute.xlu0 %1206
        %1208 = vrot.lane.b32.xlu0 %v1191, 96
        %v1209 = vpop.permute.xlu0 %1208
        %1210 = vrot.lane.b32.xlu0 %v1192, 96
        %v1211 = vpop.permute.xlu0 %1210
        %1212 = vrot.lane.b32.xlu0 %v1193, 96
        %v1213 = vpop.permute.xlu0 %1212
        %1214 = vrot.lane.b32.xlu0 %v1194, 96
        %v1215 = vpop.permute.xlu0 %1214
        %1216 = vrot.lane.b32.xlu0 %v1195, 96
        %v1217 = vpop.permute.xlu0 %1216
        %1218 = vrot.lane.b32.xlu0 %v1196, 96
        %v1219 = vpop.permute.xlu0 %1218
        %1220 = vrot.lane.b32.xlu0 %v1197, 96
        %v1221 = vpop.permute.xlu0 %1220
        %vm1222 = vcmask 785408
        %v1223 = vsel %vm1222, %v1207, %v1209
        %v1224 = vsel %vm1222, %v1211, %v1213
        %v1225 = vsel %vm1222, %v1215, %v1217
        %v1226 = vsel %vm1222, %v1219, %v1221
        %v1231 = vadd.f32 %v1170, %v1223
        %v1232 = vadd.f32 %v1171, %v1224
        %v1233 = vadd.f32 %v1172, %v1225
        %v1234 = vadd.f32 %v1173, %v1226
        %1235 = vset.pattern.permute.xlu0 7
        %1236 = vperm.xlu0 %1235, %v913
        %v1237 = vpop.permute.xlu0 %1236
        %1239 = vset.pattern.permute.xlu0 7
        %1240 = vperm.xlu0 %1239, %v914
        %v1241 = vpop.permute.xlu0 %1240
        %1243 = vset.pattern.permute.xlu0 7
        %1244 = vperm.xlu0 %1243, %v915
        %v1245 = vpop.permute.xlu0 %1244
        %1247 = vset.pattern.permute.xlu0 7
        %1248 = vperm.xlu0 %1247, %v916
        %v1249 = vpop.permute.xlu0 %1248
        %v1251 = vmul.f32 %v778, %v1237
        %v1252 = vmul.f32 %v779, %v1237
        %v1253 = vmul.f32 %v780, %v1241
        %v1254 = vmul.f32 %v781, %v1241
        %v1255 = vmul.f32 %v782, %v1245
        %v1256 = vmul.f32 %v783, %v1245
        %v1257 = vmul.f32 %v784, %v1249
        %v1258 = vmul.f32 %v785, %v1249
        %1267 = vrot.lane.b32.xlu0 %v1251, 96
        %v1268 = vpop.permute.xlu0 %1267
        %1269 = vrot.lane.b32.xlu0 %v1252, 96
        %v1270 = vpop.permute.xlu0 %1269
        %1271 = vrot.lane.b32.xlu0 %v1253, 96
        %v1272 = vpop.permute.xlu0 %1271
        %1273 = vrot.lane.b32.xlu0 %v1254, 96
        %v1274 = vpop.permute.xlu0 %1273
        %1275 = vrot.lane.b32.xlu0 %v1255, 96
        %v1276 = vpop.permute.xlu0 %1275
        %1277 = vrot.lane.b32.xlu0 %v1256, 96
        %v1278 = vpop.permute.xlu0 %1277
        %1279 = vrot.lane.b32.xlu0 %v1257, 96
        %v1280 = vpop.permute.xlu0 %1279
        %1281 = vrot.lane.b32.xlu0 %v1258, 96
        %v1282 = vpop.permute.xlu0 %1281
        %v1283 = vsel %vm1222, %v1268, %v1270
        %v1284 = vsel %vm1222, %v1272, %v1274
        %v1285 = vsel %vm1222, %v1276, %v1278
        %v1286 = vsel %vm1222, %v1280, %v1282
        %v1291 = vadd.f32 %v1231, %v1283
        %v1292 = vadd.f32 %v1232, %v1284
        %v1293 = vadd.f32 %v1233, %v1285
        %v1294 = vadd.f32 %v1234, %v1286
        %1295 = vset.pattern.permute.xlu0 8
        %1296 = vperm.xlu0 %1295, %v913
        %v1297 = vpop.permute.xlu0 %1296
        %1299 = vset.pattern.permute.xlu0 8
        %1300 = vperm.xlu0 %1299, %v914
        %v1301 = vpop.permute.xlu0 %1300
        %1303 = vset.pattern.permute.xlu0 8
        %1304 = vperm.xlu0 %1303, %v915
        %v1305 = vpop.permute.xlu0 %1304
        %1307 = vset.pattern.permute.xlu0 8
        %1308 = vperm.xlu0 %1307, %v916
        %v1309 = vpop.permute.xlu0 %1308
        %v1311 = vmul.f32 %v905, %v1297
        %v1312 = vmul.f32 %v906, %v1297
        %v1313 = vmul.f32 %v907, %v1301
        %v1314 = vmul.f32 %v908, %v1301
        %v1315 = vmul.f32 %v909, %v1305
        %v1316 = vmul.f32 %v910, %v1305
        %v1317 = vmul.f32 %v911, %v1309
        %v1318 = vmul.f32 %v912, %v1309
        %1327 = vrot.lane.b32.xlu0 %v1311, 96
        %v1328 = vpop.permute.xlu0 %1327
        %1329 = vrot.lane.b32.xlu0 %v1312, 96
        %v1330 = vpop.permute.xlu0 %1329
        %1331 = vrot.lane.b32.xlu0 %v1313, 96
        %v1332 = vpop.permute.xlu0 %1331
        %1333 = vrot.lane.b32.xlu0 %v1314, 96
        %v1334 = vpop.permute.xlu0 %1333
        %1335 = vrot.lane.b32.xlu0 %v1315, 96
        %v1336 = vpop.permute.xlu0 %1335
        %1337 = vrot.lane.b32.xlu0 %v1316, 96
        %v1338 = vpop.permute.xlu0 %1337
        %1339 = vrot.lane.b32.xlu0 %v1317, 96
        %v1340 = vpop.permute.xlu0 %1339
        %1341 = vrot.lane.b32.xlu0 %v1318, 96
        %v1342 = vpop.permute.xlu0 %1341
        %v1343 = vsel %vm1222, %v1328, %v1330
        %v1344 = vsel %vm1222, %v1332, %v1334
        %v1345 = vsel %vm1222, %v1336, %v1338
        %v1346 = vsel %vm1222, %v1340, %v1342
        %v1351 = vadd.f32 %v1291, %v1343
        %v1352 = vadd.f32 %v1292, %v1344
        %v1353 = vadd.f32 %v1293, %v1345
        %v1354 = vadd.f32 %v1294, %v1346
        %v1355 = vld [vmem:[%s8] sm:$0xff]
        %v1356 = vld [vmem:[%s8 + $0x8] sm:$0xff]
        %v1357 = vld [vmem:[%s8 + $0x10] sm:$0xff]
        %v1358 = vld [vmem:[%s8 + $0x18] sm:$0xff]
        %1360 = vset.pattern.permute.xlu0 0
        %1361 = vperm.xlu0 %1360, %v1355
        %v1362 = vpop.permute.xlu0 %1361
        %1365 = vset.pattern.permute.xlu0 0
        %1366 = vperm.xlu0 %1365, %v1356
        %v1367 = vpop.permute.xlu0 %1366
        %1370 = vset.pattern.permute.xlu0 0
        %1371 = vperm.xlu0 %1370, %v1357
        %v1372 = vpop.permute.xlu0 %1371
        %1375 = vset.pattern.permute.xlu0 0
        %1376 = vperm.xlu0 %1375, %v1358
        %v1377 = vpop.permute.xlu0 %1376
        %v1379 = vadd.f32 %v1351, %v1362
        %v1380 = vadd.f32 %v1352, %v1367
        %v1381 = vadd.f32 %v1353, %v1372
        %v1382 = vadd.f32 %v1354, %v1377
        %v1383 = vmul.f32 %v1379, %v1381
        %v1384 = vmul.f32 %v1380, %v1382
        %1385 = vst [vmem:[%s463] sm:$0xff] %v1383
        %1386 = vst [vmem:[%s463 + $0x8] sm:$0xff] %v1384
        %1387 = vadd.xlane.f32.xlu0 %v1383
        %v1388 = vpop.xlane.xlu0 %1387
        %1389 = vadd.xlane.f32.xlu0 %v1384
        %v1390 = vpop.xlane.xlu0 %1389
        %1391 = vst.msk [vmem:[%s501] sm:$0xff] %vm836, %v1388
        %1392 = vst.msk [vmem:[%s501 + $0x8] sm:$0xff] %vm836, %v1390
        %s1393 = sand.u32 %s254, 1
        %s1394 = sand.u32 %s254, 1
        %s1395 = smul.addr %s1394, 16
        %s1396 = scalar_lea.vmem [#allocation3], %s1395
        %p1397 = scmp.lt.s32.totalorder %s26, 1
        %s1398 = scalar_select %p1397, %s26, 1
        %p1399 = scmp.lt.s32.totalorder %s27, 1
        %s1400 = scalar_select %p1399, %s27, 1
        %s1401 = smul.addr %s1400, 2
        %s1402 = smul.addr %s1398, 4
        %s1403 = sadd.s32 %s1401, %s1402
        %s1404 = smul.addr %s1403, 8
        %s1405 = scalar_lea.vmem %s10, %s1404
        // Predicated region
        $region95: #{nafblock_forward.2} parent=89 // pred_check
          %p1406 = pneg %p264
        $region96: #{nafblock_forward.2} parent=89 // pred_check_branch
          %1408 = sbr.rel (%p1406) target = $region98
        $region97: #{nafblock_forward.2} parent=89 // pred_region
          %s1409 = smul.addr %s26, 4
          %s1410 = sadd.s32 %s27, %s1409
          %s1411 = smul.addr %s1410, 8
          %s1412 = scalar_lea.vmem %s9, %s1411
          // Predicated region
          $region99: #{nafblock_forward.2} parent=97 // pred_check
            _
          $region100: #{nafblock_forward.2} parent=97 // pred_check_branch
            %1414 = sbr.rel (0) target = $region102
          $region101: #{nafblock_forward.2} parent=97 // pred_region
            // Predicated region
            $region103: #{nafblock_forward.2} parent=101 // pred_check
              _
            $region104: #{nafblock_forward.2} parent=101 // pred_check_branch
              %1416 = sbr.rel (0) target = $region106
            $region105: #{nafblock_forward.2} parent=101 // pred_region
              // Predicated region
              $region118: #{nafblock_forward.2} parent=105 // pred_check
                _
              $region119: #{nafblock_forward.2} parent=105 // pred_check_branch
                %1434 = sbr.rel (0) target = $region121
              $region120: #{nafblock_forward.2} parent=105 // pred_region
                loop: start=0, step=1, limit=1
                $region122: #{nafblock_forward.2} parent=120 // loop_pre_header
                  _
                $region123: #{nafblock_forward.2} parent=120 // loop_header
                  %s1436 = sphi 0, %s1440
                  %p1437 = scmp.ge.s32.totalorder %s1436, 1
                  %s1441 = sphi %s1396, %s1396
                  %s1442 = sphi %s1412, %s1412
                $region124: #{nafblock_forward.2} parent=120 // loop_header_branch
                  %1439 = sbr.rel (%p1437) target = $region128
                $region125: #{nafblock_forward.2} parent=120 // loop_body
                  %v1443 = vld [vmem:[%s1441] sm:$0xff]
                  %1444 = vst [vmem:[%s1442] sm:$0xff] %v1443
                  %v1445 = vld [vmem:[%s1441 + $0x8] sm:$0xff]
                  %1446 = vst [vmem:[%s1442 + $0x10] sm:$0xff] %v1445
                $region126: #{nafblock_forward.2} parent=120 // loop_footer
                  %s1440 = sadd.s32 1, %s1436
                $region127: #{nafblock_forward.2} parent=120 // loop_footer_branch
                  %1435 = sbr.rel target = $region123
                $region128: #{nafblock_forward.2} parent=120 // loop_exit
                  _
              $region121: #{nafblock_forward.2} parent=105 // pred_fallthru
                _
              // Predicated region
              $region129: #{nafblock_forward.2} parent=105 // pred_check
                _
              $region130: #{nafblock_forward.2} parent=105 // pred_check_branch
                %1448 = sbr.rel target = $region132
              $region131: #{nafblock_forward.2} parent=105 // pred_region
                _
              $region132: #{nafblock_forward.2} parent=105 // pred_fallthru
                _
            $region106: #{nafblock_forward.2} parent=101 // pred_fallthru
              _
            // Predicated region
            $region107: #{nafblock_forward.2} parent=101 // pred_check
              _
            $region108: #{nafblock_forward.2} parent=101 // pred_check_branch
              %1418 = sbr.rel target = $region110
            $region109: #{nafblock_forward.2} parent=101 // pred_region
              %s1420 = ssub.s32 256, 1
              loop: start=0, step=1, limit=1
              $region111: #{nafblock_forward.2} parent=109 // loop_pre_header
                _
              $region112: #{nafblock_forward.2} parent=109 // loop_header
                %s1422 = sphi 0, %s1426
                %p1423 = scmp.ge.s32.totalorder %s1422, 1
                %s1427 = sphi %s1396, %s1396
                %s1428 = sphi %s1412, %s1412
              $region113: #{nafblock_forward.2} parent=109 // loop_header_branch
                %1425 = sbr.rel (%p1423) target = $region117
              $region114: #{nafblock_forward.2} parent=109 // loop_body
                %v1429 = vld [vmem:[%s1427] sm:%s1420]
                %1430 = vst [vmem:[%s1428] sm:%s1420] %v1429
                %v1431 = vld [vmem:[%s1427 + $0x8] sm:%s1420]
                %1432 = vst [vmem:[%s1428 + $0x10] sm:%s1420] %v1431
              $region115: #{nafblock_forward.2} parent=109 // loop_footer
                %s1426 = sadd.s32 1, %s1422
              $region116: #{nafblock_forward.2} parent=109 // loop_footer_branch
                %1421 = sbr.rel target = $region112
              $region117: #{nafblock_forward.2} parent=109 // loop_exit
                _
            $region110: #{nafblock_forward.2} parent=101 // pred_fallthru
              _
          $region102: #{nafblock_forward.2} parent=97 // pred_fallthru
            _
          %1449 = vnop
        $region98: #{nafblock_forward.2} parent=89 // pred_fallthru
          _
        // Predicated region
        $region133: #{nafblock_forward.2} parent=89 // pred_check
          %p1450 = pneg %p292
        $region134: #{nafblock_forward.2} parent=89 // pred_check_branch
          %1452 = sbr.rel (%p1450) target = $region136
        $region135: #{nafblock_forward.2} parent=89 // pred_region
          _
        $region136: #{nafblock_forward.2} parent=89 // pred_fallthru
          _
      $region90: #{nafblock_forward.2} parent=5 // pred_fallthru
        _
      %p1453 = scmp.le.s32.totalorder 2, %s17
      // Predicated region
      $region137: #{nafblock_forward.2} parent=5 // pred_check
        %p1454 = pneg %p1453
      $region138: #{nafblock_forward.2} parent=5 // pred_check_branch
        %1456 = sbr.rel (%p1454) target = $region140
      $region139: #{nafblock_forward.2} parent=5 // pred_region
        %s1457 = ssub.s32 %s17, 2
        // Predicated region
        $region141: #{nafblock_forward.2} parent=139 // pred_check
          %p1458 = pneg %p270
        $region142: #{nafblock_forward.2} parent=139 // pred_check_branch
          %1460 = sbr.rel (%p1458) target = $region144
        $region143: #{nafblock_forward.2} parent=139 // pred_region
          %s1461 = sand.u32 %s255, 1
          %s1462 = sand.u32 %s255, 1
          %s1463 = smul.addr %s1462, 16
          %s1464 = scalar_lea.vmem [#allocation3], %s1463
        $region144: #{nafblock_forward.2} parent=139 // pred_fallthru
          _
        // Predicated region
        $region145: #{nafblock_forward.2} parent=139 // pred_check
          %p1465 = pneg %p298
        $region146: #{nafblock_forward.2} parent=139 // pred_check_branch
          %1467 = sbr.rel (%p1465) target = $region148
        $region147: #{nafblock_forward.2} parent=139 // pred_region
          %p1468 = scmp.lt.s32.totalorder %s28, 1
          %s1469 = scalar_select %p1468, %s28, 1
          %p1470 = scmp.lt.s32.totalorder %s29, 1
          %s1471 = scalar_select %p1470, %s29, 1
          %s1472 = smul.addr %s1471, 2
          %s1473 = smul.addr %s1469, 4
          %s1474 = sadd.s32 %s1472, %s1473
          %s1475 = smul.addr %s1474, 8
          %s1476 = scalar_lea.vmem %s10, %s1475
        $region148: #{nafblock_forward.2} parent=139 // pred_fallthru
          _
      $region140: #{nafblock_forward.2} parent=5 // pred_fallthru
        _
    $region6: #{nafblock_forward.2} parent=1 // loop_footer
      %s21 = sadd.s32 1, %s17
    $region7: #{nafblock_forward.2} parent=1 // loop_footer_branch
      %16 = sbr.rel target = $region3
    $region8: #{nafblock_forward.2} parent=1 // loop_exit
      _

</llo_original>
